<compile_context>
chip_gen: v5e
topology: v5e:2x2
jax: 0.10.0
libtpu: 0.0.40
codegen_flags: <defaults>
</compile_context>

<pallas_src>
import jax
import jax.numpy as jnp
import numpy as np
from jax.experimental import pallas as pl
from jax.experimental.pallas import tpu as pltpu


def _round_up(x, m):
    return (x + m - 1) // m * m


# ------------------- fused LSTM + output-projection kernel ------------------
def decoder_kernel(x_ref, wih_ref, whh_ref, b_ref, wout_ref, bout_ref,
                   out_ref, h_all_sc):
    B, T, E = x_ref.shape            # all static
    H, H4 = whh_ref.shape
    Vp = wout_ref.shape[1]

    # Hoisted input projection: one (B*T, E) @ (E, 4H) MXU matmul for the
    # whole sequence (gate order i,f,g,o, PyTorch convention).
    x_flat = x_ref[...].reshape(B * T, E)
    gx = (jnp.dot(x_flat, wih_ref[...], preferred_element_type=jnp.float32)
          + b_ref[...])                               # (B*T, 4H)
    gx = gx.reshape(B, T, H4)

    whh = whh_ref[...]                                # (H, 4H), loaded once

    # Lane mask so the nonlinearities run once per step over a full 4H vreg.
    lane = jax.lax.broadcasted_iota(jnp.int32, (B, H4), 1)
    g_mask = (lane >= 2 * H) & (lane < 3 * H)

    h = jnp.zeros((B, H), jnp.float32)
    c = jnp.zeros((B, H), jnp.float32)
    for t in range(T):                                # static T -> fully unrolled
        gates = gx[:, t, :] + jnp.dot(h, whh, preferred_element_type=jnp.float32)
        act = jnp.where(g_mask, jnp.tanh(gates), jax.nn.sigmoid(gates))
        i = act[:, 0 * H:1 * H]
        f = act[:, 1 * H:2 * H]
        g = act[:, 2 * H:3 * H]
        o = act[:, 3 * H:4 * H]
        c = f * c + i * g
        h = o * jnp.tanh(c)
        h_all_sc[:, t, :] = h                         # static batch-major store

    # Fused output projection: one (B*T, H) @ (H, Vp) matmul, lane-dense store.
    h_flat = h_all_sc[...].reshape(B * T, H)
    logits = (jnp.dot(h_flat, wout_ref[...], preferred_element_type=jnp.float32)
              + bout_ref[...])                        # (B*T, Vp)
    out_ref[...] = logits.reshape(B, T, Vp)


def fused_decoder(x, wih_t, whh_t, b, wout_t, bout):
    """x: (Bp, T, E) f32; weights pre-transposed (in, out); vocab pre-padded."""
    Bp, T, E = x.shape
    H, H4 = whh_t.shape
    Vp = wout_t.shape[1]
    return pl.pallas_call(
        decoder_kernel,
        out_shape=jax.ShapeDtypeStruct((Bp, T, Vp), jnp.float32),
        grid_spec=pltpu.PrefetchScalarGridSpec(
            num_scalar_prefetch=0,
            grid=(1,),                                # single invocation
            in_specs=[
                pl.BlockSpec((Bp, T, E), lambda i: (0, 0, 0)),
                pl.BlockSpec((E, H4), lambda i: (0, 0)),
                pl.BlockSpec((H, H4), lambda i: (0, 0)),
                pl.BlockSpec((1, H4), lambda i: (0, 0)),
                pl.BlockSpec((H, Vp), lambda i: (0, 0)),
                pl.BlockSpec((1, Vp), lambda i: (0, 0)),
            ],
            out_specs=pl.BlockSpec((Bp, T, Vp), lambda i: (0, 0, 0)),
            scratch_shapes=[pltpu.VMEM((Bp, T, H), jnp.float32)],
        ),
        compiler_params=pltpu.CompilerParams(
            dimension_semantics=("arbitrary",)),
    )(x, wih_t, whh_t, b, wout_t, bout)


# --------------------- one-time parameter preparation -----------------------
def prepare_params(raw):
    """Transpose weights to (in, out), fuse LSTM biases, pad vocab to 128 lanes."""
    H4, E = raw["w_ih"].shape
    H = H4 // 4
    V = raw["w_out"].shape[0]
    Vp = _round_up(V, 128)
    wih_t = jnp.asarray(raw["w_ih"], jnp.float32).T                      # (E, 4H)
    whh_t = jnp.asarray(raw["w_hh"], jnp.float32).T                      # (H, 4H)
    b = (raw["b_ih"] + raw["b_hh"]).astype(jnp.float32).reshape(1, H4)   # (1, 4H)
    wout_t = jnp.pad(jnp.asarray(raw["w_out"], jnp.float32).T,
                     ((0, 0), (0, Vp - V)))                              # (H, Vp)
    bout = jnp.pad(raw["b_out"].astype(jnp.float32),
                   (0, Vp - V)).reshape(1, Vp)                           # (1, Vp)
    return {
        "embedding": jnp.asarray(raw["embedding"], jnp.float32),
        "wih_t": wih_t, "whh_t": whh_t, "b": b,
        "wout_t": wout_t, "bout": bout, "vocab": V,
    }


# ------------------------------ full forward --------------------------------
def decoder_rnn_forward(prep, features, captions):
    """features: (B, E) f32; captions: (B, L) int32 -> (B, L, vocab)."""
    # Embedding gather + concat stay as JAX glue (no dense Pallas hot path).
    embeds = jnp.take(prep["embedding"], captions[:, :-1], axis=0)       # (B, L-1, E)
    inputs = jnp.concatenate(
        [features[:, None, :].astype(jnp.float32), embeds], axis=1)      # (B, T, E)
    B, T, _ = inputs.shape
    Bp = _round_up(B, 8)                                                 # sublane-align batch
    x = jnp.pad(inputs, ((0, Bp - B), (0, 0), (0, 0)))                   # (Bp, T, E)
    out = fused_decoder(x, prep["wih_t"], prep["whh_t"], prep["b"],
                        prep["wout_t"], prep["bout"])                    # (Bp, T, Vp)
    return out[:B, :, :prep["vocab"]]


# ---------------------------- pure-JAX reference ----------------------------
def decoder_rnn_reference(params, features, captions):
    embeds = jnp.take(params["embedding"], captions[:, :-1], axis=0)
    inputs = jnp.concatenate([features[:, None, :], embeds], axis=1)
    B, T, E = inputs.shape
    H = params["w_hh"].shape[1]
    w_ih_t = params["w_ih"].T
    w_hh_t = params["w_hh"].T
    b = params["b_ih"] + params["b_hh"]

    def step(carry, x_t):
        h, c = carry
        gates = x_t @ w_ih_t + h @ w_hh_t + b
        i = jax.nn.sigmoid(gates[:, 0 * H:1 * H])
        f = jax.nn.sigmoid(gates[:, 1 * H:2 * H])
        g = jnp.tanh(gates[:, 2 * H:3 * H])
        o = jax.nn.sigmoid(gates[:, 3 * H:4 * H])
        c = f * c + i * g
        h = o * jnp.tanh(c)
        return (h, c), h

    h0 = jnp.zeros((B, H), jnp.float32)
    _, hs = jax.lax.scan(step, (h0, h0), jnp.transpose(inputs, (1, 0, 2)))
    h_bth = jnp.transpose(hs, (1, 0, 2))
    return h_bth @ params["w_out"].T + params["b_out"]


# --------------------------------- main --------------------------------------
if __name__ == "__main__":
    embed_size, hidden_size, vocab_size = 32, 32, 64
    B, L = 2, 8   # captions length L -> LSTM runs T = L steps (features + L-1 embeds)

    key = jax.random.PRNGKey(0)
    ks = jax.random.split(key, 8)
    bound = 1.0 / np.sqrt(hidden_size)

    params = {
        "embedding": jax.random.normal(ks[0], (vocab_size, embed_size), jnp.float32),
        "w_ih": jax.random.uniform(ks[1], (4 * hidden_size, embed_size),
                                   jnp.float32, -bound, bound),
        "w_hh": jax.random.uniform(ks[2], (4 * hidden_size, hidden_size),
                                   jnp.float32, -bound, bound),
        "b_ih": jax.random.uniform(ks[3], (4 * hidden_size,), jnp.float32, -bound, bound),
        "b_hh": jax.random.uniform(ks[4], (4 * hidden_size,), jnp.float32, -bound, bound),
        "w_out": jax.random.uniform(ks[5], (vocab_size, hidden_size),
                                    jnp.float32, -bound, bound),
        "b_out": jax.random.uniform(ks[6], (vocab_size,), jnp.float32, -bound, bound),
    }

    features = jax.random.normal(ks[7], (B, embed_size), jnp.float32)
    captions = jax.random.randint(jax.random.PRNGKey(1), (B, L), 0, vocab_size,
                                  dtype=jnp.int32)

    prep = prepare_params(params)          # one-time weight layout prep
    out = decoder_rnn_forward(prep, features, captions)
    out = jax.block_until_ready(out)

    ref = jax.block_until_ready(decoder_rnn_reference(params, features, captions))
    np.testing.assert_allclose(np.asarray(out), np.asarray(ref), rtol=1e-5, atol=1e-5)

    assert out.shape == (B, L, vocab_size)
    print("KERNEL_OK")
</pallas_src>

<mosaic_0001>
module attributes {stable_mosaic.version = 11 : i64} {
  func.func @decoder_kernel(%arg0: i32, %arg1: memref<8x8x32xf32, #tpu.memory_space<vmem>>, %arg2: memref<32x128xf32, #tpu.memory_space<vmem>>, %arg3: memref<32x128xf32, #tpu.memory_space<vmem>>, %arg4: memref<1x128xf32, #tpu.memory_space<vmem>>, %arg5: memref<32x128xf32, #tpu.memory_space<vmem>>, %arg6: memref<1x128xf32, #tpu.memory_space<vmem>>, %arg7: memref<8x8x128xf32, #tpu.memory_space<vmem>>, %arg8: memref<8x8x32xf32, #tpu.memory_space<vmem>>) attributes {dimension_semantics = [#tpu.dimension_semantics<arbitrary>], iteration_bounds = array<i64: 1>, scalar_prefetch = 0 : i64, scratch_operands = 1 : i64, tpu.core_type = #tpu.core_type<tc>, window_params = [{pipeline_mode = #tpu.pipeline_mode<synchronous>, transform_indices = @transform_0, window_bounds = array<i64: 8, 8, 32>}, {pipeline_mode = #tpu.pipeline_mode<synchronous>, transform_indices = @transform_1, window_bounds = array<i64: 32, 128>}, {pipeline_mode = #tpu.pipeline_mode<synchronous>, transform_indices = @transform_2, window_bounds = array<i64: 32, 128>}, {pipeline_mode = #tpu.pipeline_mode<synchronous>, transform_indices = @transform_3, window_bounds = array<i64: 1, 128>}, {pipeline_mode = #tpu.pipeline_mode<synchronous>, transform_indices = @transform_4, window_bounds = array<i64: 32, 128>}, {pipeline_mode = #tpu.pipeline_mode<synchronous>, transform_indices = @transform_5, window_bounds = array<i64: 1, 128>}, {pipeline_mode = #tpu.pipeline_mode<synchronous>, transform_indices = @transform_6, window_bounds = array<i64: 8, 8, 128>}]} {
    %c0 = arith.constant 0 : index
    %c0_0 = arith.constant 0 : index
    %c0_1 = arith.constant 0 : index
    %0 = vector.load %arg1[%c0, %c0_0, %c0_1] : memref<8x8x32xf32, #tpu.memory_space<vmem>>, vector<8x8x32xf32>
    %1 = vector.shape_cast %0 : vector<8x8x32xf32> to vector<64x32xf32>
    %c0_2 = arith.constant 0 : index
    %c0_3 = arith.constant 0 : index
    %2 = vector.load %arg2[%c0_2, %c0_3] : memref<32x128xf32, #tpu.memory_space<vmem>>, vector<32x128xf32>
    %cst = arith.constant dense<0.000000e+00> : vector<64x128xf32>
    %3 = tpu.matmul %1, %2, %cst {dimension_numbers = #tpu.dot_dimension_numbers<[1], [0], [0], [1], [0, 0, 1, 1], [], []>} : vector<64x32xf32>, vector<32x128xf32>, vector<64x128xf32> -> vector<64x128xf32>
    %c0_4 = arith.constant 0 : index
    %c0_5 = arith.constant 0 : index
    %4 = vector.load %arg4[%c0_4, %c0_5] : memref<1x128xf32, #tpu.memory_space<vmem>>, vector<1x128xf32>
    %5 = vector.broadcast %4 : vector<1x128xf32> to vector<64x128xf32>
    %6 = arith.addf %3, %5 : vector<64x128xf32>
    %7 = vector.shape_cast %6 : vector<64x128xf32> to vector<8x8x128xf32>
    %c0_6 = arith.constant 0 : index
    %c0_7 = arith.constant 0 : index
    %8 = vector.load %arg3[%c0_6, %c0_7] : memref<32x128xf32, #tpu.memory_space<vmem>>, vector<32x128xf32>
    %9 = tpu.iota {dimensions = array<i32: 1>} : vector<8x128xi32>
    %c64_i32 = arith.constant 64 : i32
    %10 = vector.broadcast %c64_i32 : i32 to vector<8x128xi32>
    %11 = arith.cmpi sge, %9, %10 : vector<8x128xi32>
    %c96_i32 = arith.constant 96 : i32
    %12 = vector.broadcast %c96_i32 : i32 to vector<8x128xi32>
    %13 = arith.cmpi slt, %9, %12 : vector<8x128xi32>
    %14 = arith.andi %11, %13 : vector<8x128xi1>
    %cst_8 = arith.constant 0.000000e+00 : f32
    %15 = vector.broadcast %cst_8 : f32 to vector<8x32xf32>
    %cst_9 = arith.constant 0.000000e+00 : f32
    %16 = vector.broadcast %cst_9 : f32 to vector<8x32xf32>
    %17 = vector.extract_strided_slice %7 {offsets = [0, 0, 0], sizes = [8, 1, 128], strides = [1, 1, 1]} : vector<8x8x128xf32> to vector<8x1x128xf32>
    %18 = vector.shape_cast %17 : vector<8x1x128xf32> to vector<8x128xf32>
    %cst_10 = arith.constant dense<0.000000e+00> : vector<8x128xf32>
    %19 = tpu.matmul %15, %8, %cst_10 {dimension_numbers = #tpu.dot_dimension_numbers<[1], [0], [0], [1], [0, 0, 1, 1], [], []>} : vector<8x32xf32>, vector<32x128xf32>, vector<8x128xf32> -> vector<8x128xf32>
    %20 = arith.addf %18, %19 : vector<8x128xf32>
    %21 = math.tanh %20 : vector<8x128xf32>
    %22 = arith.negf %20 : vector<8x128xf32>
    %23 = math.exp %22 : vector<8x128xf32>
    %cst_11 = arith.constant 1.000000e+00 : f32
    %24 = vector.broadcast %cst_11 : f32 to vector<8x128xf32>
    %25 = arith.addf %24, %23 : vector<8x128xf32>
    %26 = arith.divf %24, %25 : vector<8x128xf32>
    %27 = arith.select %14, %21, %26 : vector<8x128xi1>, vector<8x128xf32>
    %28 = vector.extract_strided_slice %27 {offsets = [0, 0], sizes = [8, 32], strides = [1, 1]} : vector<8x128xf32> to vector<8x32xf32>
    %29 = vector.extract_strided_slice %27 {offsets = [0, 32], sizes = [8, 32], strides = [1, 1]} : vector<8x128xf32> to vector<8x32xf32>
    %30 = vector.extract_strided_slice %27 {offsets = [0, 64], sizes = [8, 32], strides = [1, 1]} : vector<8x128xf32> to vector<8x32xf32>
    %31 = vector.extract_strided_slice %27 {offsets = [0, 96], sizes = [8, 32], strides = [1, 1]} : vector<8x128xf32> to vector<8x32xf32>
    %32 = arith.mulf %29, %16 : vector<8x32xf32>
    %33 = arith.mulf %28, %30 : vector<8x32xf32>
    %34 = arith.addf %32, %33 : vector<8x32xf32>
    %35 = math.tanh %34 : vector<8x32xf32>
    %36 = arith.mulf %31, %35 : vector<8x32xf32>
    %c0_12 = arith.constant 0 : index
    %c0_13 = arith.constant 0 : index
    %c0_14 = arith.constant 0 : index
    %37 = vector.load %arg8[%c0_12, %c0_13, %c0_14] : memref<8x8x32xf32, #tpu.memory_space<vmem>>, vector<8x1x32xf32>
    %38 = vector.shape_cast %37 : vector<8x1x32xf32> to vector<8x32xf32>
    %39 = vector.shape_cast %36 : vector<8x32xf32> to vector<8x1x32xf32>
    tpu.vector_store %arg8[%c0_12, %c0_13, %c0_14], %39 {strides = array<i32>} : memref<8x8x32xf32, #tpu.memory_space<vmem>>, vector<8x1x32xf32>,
    %40 = vector.extract_strided_slice %7 {offsets = [0, 1, 0], sizes = [8, 1, 128], strides = [1, 1, 1]} : vector<8x8x128xf32> to vector<8x1x128xf32>
    %41 = vector.shape_cast %40 : vector<8x1x128xf32> to vector<8x128xf32>
    %cst_15 = arith.constant dense<0.000000e+00> : vector<8x128xf32>
    %42 = tpu.matmul %36, %8, %cst_15 {dimension_numbers = #tpu.dot_dimension_numbers<[1], [0], [0], [1], [0, 0, 1, 1], [], []>} : vector<8x32xf32>, vector<32x128xf32>, vector<8x128xf32> -> vector<8x128xf32>
    %43 = arith.addf %41, %42 : vector<8x128xf32>
    %44 = math.tanh %43 : vector<8x128xf32>
    %45 = arith.negf %43 : vector<8x128xf32>
    %46 = math.exp %45 : vector<8x128xf32>
    %cst_16 = arith.constant 1.000000e+00 : f32
    %47 = vector.broadcast %cst_16 : f32 to vector<8x128xf32>
    %48 = arith.addf %47, %46 : vector<8x128xf32>
    %49 = arith.divf %47, %48 : vector<8x128xf32>
    %50 = arith.select %14, %44, %49 : vector<8x128xi1>, vector<8x128xf32>
    %51 = vector.extract_strided_slice %50 {offsets = [0, 0], sizes = [8, 32], strides = [1, 1]} : vector<8x128xf32> to vector<8x32xf32>
    %52 = vector.extract_strided_slice %50 {offsets = [0, 32], sizes = [8, 32], strides = [1, 1]} : vector<8x128xf32> to vector<8x32xf32>
    %53 = vector.extract_strided_slice %50 {offsets = [0, 64], sizes = [8, 32], strides = [1, 1]} : vector<8x128xf32> to vector<8x32xf32>
    %54 = vector.extract_strided_slice %50 {offsets = [0, 96], sizes = [8, 32], strides = [1, 1]} : vector<8x128xf32> to vector<8x32xf32>
    %55 = arith.mulf %52, %34 : vector<8x32xf32>
    %56 = arith.mulf %51, %53 : vector<8x32xf32>
    %57 = arith.addf %55, %56 : vector<8x32xf32>
    %58 = math.tanh %57 : vector<8x32xf32>
    %59 = arith.mulf %54, %58 : vector<8x32xf32>
    %c0_17 = arith.constant 0 : index
    %c1 = arith.constant 1 : index
    %c0_18 = arith.constant 0 : index
    %60 = vector.load %arg8[%c0_17, %c1, %c0_18] : memref<8x8x32xf32, #tpu.memory_space<vmem>>, vector<8x1x32xf32>
    %61 = vector.shape_cast %60 : vector<8x1x32xf32> to vector<8x32xf32>
    %62 = vector.shape_cast %59 : vector<8x32xf32> to vector<8x1x32xf32>
    tpu.vector_store %arg8[%c0_17, %c1, %c0_18], %62 {strides = array<i32>} : memref<8x8x32xf32, #tpu.memory_space<vmem>>, vector<8x1x32xf32>,
    %63 = vector.extract_strided_slice %7 {offsets = [0, 2, 0], sizes = [8, 1, 128], strides = [1, 1, 1]} : vector<8x8x128xf32> to vector<8x1x128xf32>
    %64 = vector.shape_cast %63 : vector<8x1x128xf32> to vector<8x128xf32>
    %cst_19 = arith.constant dense<0.000000e+00> : vector<8x128xf32>
    %65 = tpu.matmul %59, %8, %cst_19 {dimension_numbers = #tpu.dot_dimension_numbers<[1], [0], [0], [1], [0, 0, 1, 1], [], []>} : vector<8x32xf32>, vector<32x128xf32>, vector<8x128xf32> -> vector<8x128xf32>
    %66 = arith.addf %64, %65 : vector<8x128xf32>
    %67 = math.tanh %66 : vector<8x128xf32>
    %68 = arith.negf %66 : vector<8x128xf32>
    %69 = math.exp %68 : vector<8x128xf32>
    %cst_20 = arith.constant 1.000000e+00 : f32
    %70 = vector.broadcast %cst_20 : f32 to vector<8x128xf32>
    %71 = arith.addf %70, %69 : vector<8x128xf32>
    %72 = arith.divf %70, %71 : vector<8x128xf32>
    %73 = arith.select %14, %67, %72 : vector<8x128xi1>, vector<8x128xf32>
    %74 = vector.extract_strided_slice %73 {offsets = [0, 0], sizes = [8, 32], strides = [1, 1]} : vector<8x128xf32> to vector<8x32xf32>
    %75 = vector.extract_strided_slice %73 {offsets = [0, 32], sizes = [8, 32], strides = [1, 1]} : vector<8x128xf32> to vector<8x32xf32>
    %76 = vector.extract_strided_slice %73 {offsets = [0, 64], sizes = [8, 32], strides = [1, 1]} : vector<8x128xf32> to vector<8x32xf32>
    %77 = vector.extract_strided_slice %73 {offsets = [0, 96], sizes = [8, 32], strides = [1, 1]} : vector<8x128xf32> to vector<8x32xf32>
    %78 = arith.mulf %75, %57 : vector<8x32xf32>
    %79 = arith.mulf %74, %76 : vector<8x32xf32>
    %80 = arith.addf %78, %79 : vector<8x32xf32>
    %81 = math.tanh %80 : vector<8x32xf32>
    %82 = arith.mulf %77, %81 : vector<8x32xf32>
    %c0_21 = arith.constant 0 : index
    %c2 = arith.constant 2 : index
    %c0_22 = arith.constant 0 : index
    %83 = vector.load %arg8[%c0_21, %c2, %c0_22] : memref<8x8x32xf32, #tpu.memory_space<vmem>>, vector<8x1x32xf32>
    %84 = vector.shape_cast %83 : vector<8x1x32xf32> to vector<8x32xf32>
    %85 = vector.shape_cast %82 : vector<8x32xf32> to vector<8x1x32xf32>
    tpu.vector_store %arg8[%c0_21, %c2, %c0_22], %85 {strides = array<i32>} : memref<8x8x32xf32, #tpu.memory_space<vmem>>, vector<8x1x32xf32>,
    %86 = vector.extract_strided_slice %7 {offsets = [0, 3, 0], sizes = [8, 1, 128], strides = [1, 1, 1]} : vector<8x8x128xf32> to vector<8x1x128xf32>
    %87 = vector.shape_cast %86 : vector<8x1x128xf32> to vector<8x128xf32>
    %cst_23 = arith.constant dense<0.000000e+00> : vector<8x128xf32>
    %88 = tpu.matmul %82, %8, %cst_23 {dimension_numbers = #tpu.dot_dimension_numbers<[1], [0], [0], [1], [0, 0, 1, 1], [], []>} : vector<8x32xf32>, vector<32x128xf32>, vector<8x128xf32> -> vector<8x128xf32>
    %89 = arith.addf %87, %88 : vector<8x128xf32>
    %90 = math.tanh %89 : vector<8x128xf32>
    %91 = arith.negf %89 : vector<8x128xf32>
    %92 = math.exp %91 : vector<8x128xf32>
    %cst_24 = arith.constant 1.000000e+00 : f32
    %93 = vector.broadcast %cst_24 : f32 to vector<8x128xf32>
    %94 = arith.addf %93, %92 : vector<8x128xf32>
    %95 = arith.divf %93, %94 : vector<8x128xf32>
    %96 = arith.select %14, %90, %95 : vector<8x128xi1>, vector<8x128xf32>
    %97 = vector.extract_strided_slice %96 {offsets = [0, 0], sizes = [8, 32], strides = [1, 1]} : vector<8x128xf32> to vector<8x32xf32>
    %98 = vector.extract_strided_slice %96 {offsets = [0, 32], sizes = [8, 32], strides = [1, 1]} : vector<8x128xf32> to vector<8x32xf32>
    %99 = vector.extract_strided_slice %96 {offsets = [0, 64], sizes = [8, 32], strides = [1, 1]} : vector<8x128xf32> to vector<8x32xf32>
    %100 = vector.extract_strided_slice %96 {offsets = [0, 96], sizes = [8, 32], strides = [1, 1]} : vector<8x128xf32> to vector<8x32xf32>
    %101 = arith.mulf %98, %80 : vector<8x32xf32>
    %102 = arith.mulf %97, %99 : vector<8x32xf32>
    %103 = arith.addf %101, %102 : vector<8x32xf32>
    %104 = math.tanh %103 : vector<8x32xf32>
    %105 = arith.mulf %100, %104 : vector<8x32xf32>
    %c0_25 = arith.constant 0 : index
    %c3 = arith.constant 3 : index
    %c0_26 = arith.constant 0 : index
    %106 = vector.load %arg8[%c0_25, %c3, %c0_26] : memref<8x8x32xf32, #tpu.memory_space<vmem>>, vector<8x1x32xf32>
    %107 = vector.shape_cast %106 : vector<8x1x32xf32> to vector<8x32xf32>
    %108 = vector.shape_cast %105 : vector<8x32xf32> to vector<8x1x32xf32>
    tpu.vector_store %arg8[%c0_25, %c3, %c0_26], %108 {strides = array<i32>} : memref<8x8x32xf32, #tpu.memory_space<vmem>>, vector<8x1x32xf32>,
    %109 = vector.extract_strided_slice %7 {offsets = [0, 4, 0], sizes = [8, 1, 128], strides = [1, 1, 1]} : vector<8x8x128xf32> to vector<8x1x128xf32>
    %110 = vector.shape_cast %109 : vector<8x1x128xf32> to vector<8x128xf32>
    %cst_27 = arith.constant dense<0.000000e+00> : vector<8x128xf32>
    %111 = tpu.matmul %105, %8, %cst_27 {dimension_numbers = #tpu.dot_dimension_numbers<[1], [0], [0], [1], [0, 0, 1, 1], [], []>} : vector<8x32xf32>, vector<32x128xf32>, vector<8x128xf32> -> vector<8x128xf32>
    %112 = arith.addf %110, %111 : vector<8x128xf32>
    %113 = math.tanh %112 : vector<8x128xf32>
    %114 = arith.negf %112 : vector<8x128xf32>
    %115 = math.exp %114 : vector<8x128xf32>
    %cst_28 = arith.constant 1.000000e+00 : f32
    %116 = vector.broadcast %cst_28 : f32 to vector<8x128xf32>
    %117 = arith.addf %116, %115 : vector<8x128xf32>
    %118 = arith.divf %116, %117 : vector<8x128xf32>
    %119 = arith.select %14, %113, %118 : vector<8x128xi1>, vector<8x128xf32>
    %120 = vector.extract_strided_slice %119 {offsets = [0, 0], sizes = [8, 32], strides = [1, 1]} : vector<8x128xf32> to vector<8x32xf32>
    %121 = vector.extract_strided_slice %119 {offsets = [0, 32], sizes = [8, 32], strides = [1, 1]} : vector<8x128xf32> to vector<8x32xf32>
    %122 = vector.extract_strided_slice %119 {offsets = [0, 64], sizes = [8, 32], strides = [1, 1]} : vector<8x128xf32> to vector<8x32xf32>
    %123 = vector.extract_strided_slice %119 {offsets = [0, 96], sizes = [8, 32], strides = [1, 1]} : vector<8x128xf32> to vector<8x32xf32>
    %124 = arith.mulf %121, %103 : vector<8x32xf32>
    %125 = arith.mulf %120, %122 : vector<8x32xf32>
    %126 = arith.addf %124, %125 : vector<8x32xf32>
    %127 = math.tanh %126 : vector<8x32xf32>
    %128 = arith.mulf %123, %127 : vector<8x32xf32>
    %c0_29 = arith.constant 0 : index
    %c4 = arith.constant 4 : index
    %c0_30 = arith.constant 0 : index
    %129 = vector.load %arg8[%c0_29, %c4, %c0_30] : memref<8x8x32xf32, #tpu.memory_space<vmem>>, vector<8x1x32xf32>
    %130 = vector.shape_cast %129 : vector<8x1x32xf32> to vector<8x32xf32>
    %131 = vector.shape_cast %128 : vector<8x32xf32> to vector<8x1x32xf32>
    tpu.vector_store %arg8[%c0_29, %c4, %c0_30], %131 {strides = array<i32>} : memref<8x8x32xf32, #tpu.memory_space<vmem>>, vector<8x1x32xf32>,
    %132 = vector.extract_strided_slice %7 {offsets = [0, 5, 0], sizes = [8, 1, 128], strides = [1, 1, 1]} : vector<8x8x128xf32> to vector<8x1x128xf32>
    %133 = vector.shape_cast %132 : vector<8x1x128xf32> to vector<8x128xf32>
    %cst_31 = arith.constant dense<0.000000e+00> : vector<8x128xf32>
    %134 = tpu.matmul %128, %8, %cst_31 {dimension_numbers = #tpu.dot_dimension_numbers<[1], [0], [0], [1], [0, 0, 1, 1], [], []>} : vector<8x32xf32>, vector<32x128xf32>, vector<8x128xf32> -> vector<8x128xf32>
    %135 = arith.addf %133, %134 : vector<8x128xf32>
    %136 = math.tanh %135 : vector<8x128xf32>
    %137 = arith.negf %135 : vector<8x128xf32>
    %138 = math.exp %137 : vector<8x128xf32>
    %cst_32 = arith.constant 1.000000e+00 : f32
    %139 = vector.broadcast %cst_32 : f32 to vector<8x128xf32>
    %140 = arith.addf %139, %138 : vector<8x128xf32>
    %141 = arith.divf %139, %140 : vector<8x128xf32>
    %142 = arith.select %14, %136, %141 : vector<8x128xi1>, vector<8x128xf32>
    %143 = vector.extract_strided_slice %142 {offsets = [0, 0], sizes = [8, 32], strides = [1, 1]} : vector<8x128xf32> to vector<8x32xf32>
    %144 = vector.extract_strided_slice %142 {offsets = [0, 32], sizes = [8, 32], strides = [1, 1]} : vector<8x128xf32> to vector<8x32xf32>
    %145 = vector.extract_strided_slice %142 {offsets = [0, 64], sizes = [8, 32], strides = [1, 1]} : vector<8x128xf32> to vector<8x32xf32>
    %146 = vector.extract_strided_slice %142 {offsets = [0, 96], sizes = [8, 32], strides = [1, 1]} : vector<8x128xf32> to vector<8x32xf32>
    %147 = arith.mulf %144, %126 : vector<8x32xf32>
    %148 = arith.mulf %143, %145 : vector<8x32xf32>
    %149 = arith.addf %147, %148 : vector<8x32xf32>
    %150 = math.tanh %149 : vector<8x32xf32>
    %151 = arith.mulf %146, %150 : vector<8x32xf32>
    %c0_33 = arith.constant 0 : index
    %c5 = arith.constant 5 : index
    %c0_34 = arith.constant 0 : index
    %152 = vector.load %arg8[%c0_33, %c5, %c0_34] : memref<8x8x32xf32, #tpu.memory_space<vmem>>, vector<8x1x32xf32>
    %153 = vector.shape_cast %152 : vector<8x1x32xf32> to vector<8x32xf32>
    %154 = vector.shape_cast %151 : vector<8x32xf32> to vector<8x1x32xf32>
    tpu.vector_store %arg8[%c0_33, %c5, %c0_34], %154 {strides = array<i32>} : memref<8x8x32xf32, #tpu.memory_space<vmem>>, vector<8x1x32xf32>,
    %155 = vector.extract_strided_slice %7 {offsets = [0, 6, 0], sizes = [8, 1, 128], strides = [1, 1, 1]} : vector<8x8x128xf32> to vector<8x1x128xf32>
    %156 = vector.shape_cast %155 : vector<8x1x128xf32> to vector<8x128xf32>
    %cst_35 = arith.constant dense<0.000000e+00> : vector<8x128xf32>
    %157 = tpu.matmul %151, %8, %cst_35 {dimension_numbers = #tpu.dot_dimension_numbers<[1], [0], [0], [1], [0, 0, 1, 1], [], []>} : vector<8x32xf32>, vector<32x128xf32>, vector<8x128xf32> -> vector<8x128xf32>
    %158 = arith.addf %156, %157 : vector<8x128xf32>
    %159 = math.tanh %158 : vector<8x128xf32>
    %160 = arith.negf %158 : vector<8x128xf32>
    %161 = math.exp %160 : vector<8x128xf32>
    %cst_36 = arith.constant 1.000000e+00 : f32
    %162 = vector.broadcast %cst_36 : f32 to vector<8x128xf32>
    %163 = arith.addf %162, %161 : vector<8x128xf32>
    %164 = arith.divf %162, %163 : vector<8x128xf32>
    %165 = arith.select %14, %159, %164 : vector<8x128xi1>, vector<8x128xf32>
    %166 = vector.extract_strided_slice %165 {offsets = [0, 0], sizes = [8, 32], strides = [1, 1]} : vector<8x128xf32> to vector<8x32xf32>
    %167 = vector.extract_strided_slice %165 {offsets = [0, 32], sizes = [8, 32], strides = [1, 1]} : vector<8x128xf32> to vector<8x32xf32>
    %168 = vector.extract_strided_slice %165 {offsets = [0, 64], sizes = [8, 32], strides = [1, 1]} : vector<8x128xf32> to vector<8x32xf32>
    %169 = vector.extract_strided_slice %165 {offsets = [0, 96], sizes = [8, 32], strides = [1, 1]} : vector<8x128xf32> to vector<8x32xf32>
    %170 = arith.mulf %167, %149 : vector<8x32xf32>
    %171 = arith.mulf %166, %168 : vector<8x32xf32>
    %172 = arith.addf %170, %171 : vector<8x32xf32>
    %173 = math.tanh %172 : vector<8x32xf32>
    %174 = arith.mulf %169, %173 : vector<8x32xf32>
    %c0_37 = arith.constant 0 : index
    %c6 = arith.constant 6 : index
    %c0_38 = arith.constant 0 : index
    %175 = vector.load %arg8[%c0_37, %c6, %c0_38] : memref<8x8x32xf32, #tpu.memory_space<vmem>>, vector<8x1x32xf32>
    %176 = vector.shape_cast %175 : vector<8x1x32xf32> to vector<8x32xf32>
    %177 = vector.shape_cast %174 : vector<8x32xf32> to vector<8x1x32xf32>
    tpu.vector_store %arg8[%c0_37, %c6, %c0_38], %177 {strides = array<i32>} : memref<8x8x32xf32, #tpu.memory_space<vmem>>, vector<8x1x32xf32>,
    %178 = vector.extract_strided_slice %7 {offsets = [0, 7, 0], sizes = [8, 1, 128], strides = [1, 1, 1]} : vector<8x8x128xf32> to vector<8x1x128xf32>
    %179 = vector.shape_cast %178 : vector<8x1x128xf32> to vector<8x128xf32>
    %cst_39 = arith.constant dense<0.000000e+00> : vector<8x128xf32>
    %180 = tpu.matmul %174, %8, %cst_39 {dimension_numbers = #tpu.dot_dimension_numbers<[1], [0], [0], [1], [0, 0, 1, 1], [], []>} : vector<8x32xf32>, vector<32x128xf32>, vector<8x128xf32> -> vector<8x128xf32>
    %181 = arith.addf %179, %180 : vector<8x128xf32>
    %182 = math.tanh %181 : vector<8x128xf32>
    %183 = arith.negf %181 : vector<8x128xf32>
    %184 = math.exp %183 : vector<8x128xf32>
    %cst_40 = arith.constant 1.000000e+00 : f32
    %185 = vector.broadcast %cst_40 : f32 to vector<8x128xf32>
    %186 = arith.addf %185, %184 : vector<8x128xf32>
    %187 = arith.divf %185, %186 : vector<8x128xf32>
    %188 = arith.select %14, %182, %187 : vector<8x128xi1>, vector<8x128xf32>
    %189 = vector.extract_strided_slice %188 {offsets = [0, 0], sizes = [8, 32], strides = [1, 1]} : vector<8x128xf32> to vector<8x32xf32>
    %190 = vector.extract_strided_slice %188 {offsets = [0, 32], sizes = [8, 32], strides = [1, 1]} : vector<8x128xf32> to vector<8x32xf32>
    %191 = vector.extract_strided_slice %188 {offsets = [0, 64], sizes = [8, 32], strides = [1, 1]} : vector<8x128xf32> to vector<8x32xf32>
    %192 = vector.extract_strided_slice %188 {offsets = [0, 96], sizes = [8, 32], strides = [1, 1]} : vector<8x128xf32> to vector<8x32xf32>
    %193 = arith.mulf %190, %172 : vector<8x32xf32>
    %194 = arith.mulf %189, %191 : vector<8x32xf32>
    %195 = arith.addf %193, %194 : vector<8x32xf32>
    %196 = math.tanh %195 : vector<8x32xf32>
    %197 = arith.mulf %192, %196 : vector<8x32xf32>
    %c0_41 = arith.constant 0 : index
    %c7 = arith.constant 7 : index
    %c0_42 = arith.constant 0 : index
    %198 = vector.load %arg8[%c0_41, %c7, %c0_42] : memref<8x8x32xf32, #tpu.memory_space<vmem>>, vector<8x1x32xf32>
    %199 = vector.shape_cast %198 : vector<8x1x32xf32> to vector<8x32xf32>
    %200 = vector.shape_cast %197 : vector<8x32xf32> to vector<8x1x32xf32>
    tpu.vector_store %arg8[%c0_41, %c7, %c0_42], %200 {strides = array<i32>} : memref<8x8x32xf32, #tpu.memory_space<vmem>>, vector<8x1x32xf32>,
    %c0_43 = arith.constant 0 : index
    %c0_44 = arith.constant 0 : index
    %c0_45 = arith.constant 0 : index
    %201 = vector.load %arg8[%c0_43, %c0_44, %c0_45] : memref<8x8x32xf32, #tpu.memory_space<vmem>>, vector<8x8x32xf32>
    %202 = vector.shape_cast %201 : vector<8x8x32xf32> to vector<64x32xf32>
    %c0_46 = arith.constant 0 : index
    %c0_47 = arith.constant 0 : index
    %203 = vector.load %arg5[%c0_46, %c0_47] : memref<32x128xf32, #tpu.memory_space<vmem>>, vector<32x128xf32>
    %cst_48 = arith.constant dense<0.000000e+00> : vector<64x128xf32>
    %204 = tpu.matmul %202, %203, %cst_48 {dimension_numbers = #tpu.dot_dimension_numbers<[1], [0], [0], [1], [0, 0, 1, 1], [], []>} : vector<64x32xf32>, vector<32x128xf32>, vector<64x128xf32> -> vector<64x128xf32>
    %c0_49 = arith.constant 0 : index
    %c0_50 = arith.constant 0 : index
    %205 = vector.load %arg6[%c0_49, %c0_50] : memref<1x128xf32, #tpu.memory_space<vmem>>, vector<1x128xf32>
    %206 = vector.broadcast %205 : vector<1x128xf32> to vector<64x128xf32>
    %207 = arith.addf %204, %206 : vector<64x128xf32>
    %208 = vector.shape_cast %207 : vector<64x128xf32> to vector<8x8x128xf32>
    %c0_51 = arith.constant 0 : index
    %c0_52 = arith.constant 0 : index
    %c0_53 = arith.constant 0 : index
    %209 = vector.load %arg7[%c0_51, %c0_52, %c0_53] : memref<8x8x128xf32, #tpu.memory_space<vmem>>, vector<8x8x128xf32>
    tpu.vector_store %arg7[%c0_51, %c0_52, %c0_53], %208 {strides = array<i32>} : memref<8x8x128xf32, #tpu.memory_space<vmem>>, vector<8x8x128xf32>,
    return
  }
  func.func @transform_0(%arg0: i32) -> (i32, i32, i32) {
    %c0_i32 = arith.constant 0 : i32
    %c0_i32_0 = arith.constant 0 : i32
    %c0_i32_1 = arith.constant 0 : i32
    %c0_i32_2 = arith.constant 0 : i32
    return %c0_i32, %c0_i32_0, %c0_i32_1 : i32, i32, i32
  }
  func.func @transform_1(%arg0: i32) -> (i32, i32) {
    %c0_i32 = arith.constant 0 : i32
    %c0_i32_0 = arith.constant 0 : i32
    %c0_i32_1 = arith.constant 0 : i32
    return %c0_i32, %c0_i32_0 : i32, i32
  }
  func.func @transform_2(%arg0: i32) -> (i32, i32) {
    %c0_i32 = arith.constant 0 : i32
    %c0_i32_0 = arith.constant 0 : i32
    %c0_i32_1 = arith.constant 0 : i32
    return %c0_i32, %c0_i32_0 : i32, i32
  }
  func.func @transform_3(%arg0: i32) -> (i32, i32) {
    %c0_i32 = arith.constant 0 : i32
    %c0_i32_0 = arith.constant 0 : i32
    %c0_i32_1 = arith.constant 0 : i32
    return %c0_i32, %c0_i32_0 : i32, i32
  }
  func.func @transform_4(%arg0: i32) -> (i32, i32) {
    %c0_i32 = arith.constant 0 : i32
    %c0_i32_0 = arith.constant 0 : i32
    %c0_i32_1 = arith.constant 0 : i32
    return %c0_i32, %c0_i32_0 : i32, i32
  }
  func.func @transform_5(%arg0: i32) -> (i32, i32) {
    %c0_i32 = arith.constant 0 : i32
    %c0_i32_0 = arith.constant 0 : i32
    %c0_i32_1 = arith.constant 0 : i32
    return %c0_i32, %c0_i32_0 : i32, i32
  }
  func.func @transform_6(%arg0: i32) -> (i32, i32, i32) {
    %c0_i32 = arith.constant 0 : i32
    %c0_i32_0 = arith.constant 0 : i32
    %c0_i32_1 = arith.constant 0 : i32
    %c0_i32_2 = arith.constant 0 : i32
    return %c0_i32, %c0_i32_0, %c0_i32_1 : i32, i32, i32
  }
}

</mosaic_0001>

<llo_original>
// kernel: tpu_custom_call.1
$region0: #{tpu_custom_call.1}
  #allocation0 [shape = 'u32[]', space=smem, size = 0x4, offset = 0x4, fixed_abs, tag = 'smem constant byte address 0x4 - core index']
  #allocation1 [shape = 'u32[72,128]{1,0:T(1,128)}', space=vmem, size = 0x9000, scoped, tag = 'internal scratch']
  #allocation2 [shape = 'f32[8,8,32]{2,1,0:T(8,128)}', space=vmem, size = 0x8000, scoped, tag = 'scratch operand']
  %s0 = inlined_call_operand.hbm [shape: f32[8,8,32], index: 0, kind: input, shape index: {}]
  %s1 = inlined_call_operand.hbm [shape: f32[32,128], index: 1, kind: input, shape index: {}]
  %s2 = inlined_call_operand.hbm [shape: f32[32,128], index: 2, kind: input, shape index: {}]
  %s3 = inlined_call_operand.vmem [shape: f32[1,128], index: 3, kind: input, shape index: {}]
  %s4 = inlined_call_operand.hbm [shape: f32[32,128], index: 4, kind: input, shape index: {}]
  %s5 = inlined_call_operand.vmem [shape: f32[1,128], index: 5, kind: input, shape index: {}]
  %s6 = inlined_call_operand.hbm [shape: f32[8,8,128], index: 6, kind: output, shape index: {}]
  %s7 = sld [smem:[#allocation0]]
  $region50: #{tpu_custom_call.1} parent=0
    _
  %s9 = ssub.s32 1, %s7
  %s10 = scalar_select 0, %s9, %s7
  $region1: #{tpu_custom_call.1} parent=0
    #allocation3 [shape = 'u8[32768]{0}', space=vmem, size = 0x8000, scoped, tag = 'input window, operand 0, single buffered']
    #allocation4 [shape = 's32[1]{0}', space=sflag, size = 0x4, scoped, tag = 'scoped memory for tpu_custom_call.1']
    #allocation5 [shape = 's32[1]{0}', space=sflag, size = 0x4, scoped, tag = 'scoped memory for tpu_custom_call.1']
    #allocation6 [shape = 'u8[16384]{0}', space=vmem, size = 0x4000, scoped, tag = 'input window, operand 1, single buffered']
    #allocation7 [shape = 's32[1]{0}', space=sflag, size = 0x4, scoped, tag = 'scoped memory for tpu_custom_call.1']
    #allocation8 [shape = 'u8[16384]{0}', space=vmem, size = 0x4000, scoped, tag = 'input window, operand 2, single buffered']
    #allocation9 [shape = 'u8[16384]{0}', space=vmem, size = 0x4000, scoped, tag = 'input window, operand 4, single buffered']
    #allocation10 [shape = 's32[1]{0}', space=sflag, size = 0x4, scoped, tag = 'scoped memory for tpu_custom_call.1']
    #allocation11 [shape = 'u8[32768]{0}', space=vmem, size = 0x8000, scoped, tag = 'output window, operand 0, single buffered']
    %11 = vsyncpa [#allocation4], 0
    %12 = vsyncpa [#allocation7], 0
    %13 = vsyncpa [#allocation10], 0
    %14 = vsyncpa [#allocation5], 0
    // Predicated region
    $region2: #{tpu_custom_call.1} parent=1 // pred_check
      _
    $region3: #{tpu_custom_call.1} parent=1 // pred_check_branch
      %16 = sbr.rel (0) target = $region5
    $region4: #{tpu_custom_call.1} parent=1 // pred_region
      %18 = vsyncadd [#allocation4], 0
      %s19 = sshll.u32 %s0, 4
      %s20 = int_to_ptr.hbm [resolvable:$true] %s19
      %s21 = sshll.u32 [#allocation3], 4
      %s22 = int_to_ptr.vmem [resolvable:$true] %s21
      %27 = dma.hbm_to_vmem [thread:$0]  %s20, 1024, %s22, [#allocation4], 128, 128, 8
    $region5: #{tpu_custom_call.1} parent=1 // pred_fallthru
      _
    // Predicated region
    $region6: #{tpu_custom_call.1} parent=1 // pred_check
      _
    $region7: #{tpu_custom_call.1} parent=1 // pred_check_branch
      %29 = sbr.rel (0) target = $region9
    $region8: #{tpu_custom_call.1} parent=1 // pred_region
      %31 = vsyncadd [#allocation7], 0
      %s32 = sshll.u32 %s1, 4
      %s33 = int_to_ptr.hbm [resolvable:$true] %s32
      %s34 = sshll.u32 [#allocation6], 4
      %s35 = int_to_ptr.vmem [resolvable:$true] %s34
      %40 = dma.hbm_to_vmem [thread:$0]  %s33, 512, %s35, [#allocation7], 128, 128, 8
    $region9: #{tpu_custom_call.1} parent=1 // pred_fallthru
      _
    // Predicated region
    $region10: #{tpu_custom_call.1} parent=1 // pred_check
      _
    $region11: #{tpu_custom_call.1} parent=1 // pred_check_branch
      %42 = sbr.rel (0) target = $region13
    $region12: #{tpu_custom_call.1} parent=1 // pred_region
      %44 = vsyncadd [#allocation7], 0
      %s45 = sshll.u32 %s2, 4
      %s46 = int_to_ptr.hbm [resolvable:$true] %s45
      %s47 = sshll.u32 [#allocation8], 4
      %s48 = int_to_ptr.vmem [resolvable:$true] %s47
      %53 = dma.hbm_to_vmem [thread:$0]  %s46, 512, %s48, [#allocation7], 128, 128, 8
    $region13: #{tpu_custom_call.1} parent=1 // pred_fallthru
      _
    // Predicated region
    $region14: #{tpu_custom_call.1} parent=1 // pred_check
      _
    $region15: #{tpu_custom_call.1} parent=1 // pred_check_branch
      %55 = sbr.rel (0) target = $region17
    $region16: #{tpu_custom_call.1} parent=1 // pred_region
      _
    $region17: #{tpu_custom_call.1} parent=1 // pred_fallthru
      _
    // Predicated region
    $region18: #{tpu_custom_call.1} parent=1 // pred_check
      _
    $region19: #{tpu_custom_call.1} parent=1 // pred_check_branch
      %57 = sbr.rel (0) target = $region21
    $region20: #{tpu_custom_call.1} parent=1 // pred_region
      %59 = vsyncadd [#allocation10], 0
      %s60 = sshll.u32 %s4, 4
      %s61 = int_to_ptr.hbm [resolvable:$true] %s60
      %s62 = sshll.u32 [#allocation9], 4
      %s63 = int_to_ptr.vmem [resolvable:$true] %s62
      %68 = dma.hbm_to_vmem [thread:$0]  %s61, 512, %s63, [#allocation10], 128, 128, 8
    $region21: #{tpu_custom_call.1} parent=1 // pred_fallthru
      _
    // Predicated region
    $region22: #{tpu_custom_call.1} parent=1 // pred_check
      _
    $region23: #{tpu_custom_call.1} parent=1 // pred_check_branch
      %70 = sbr.rel (0) target = $region25
    $region24: #{tpu_custom_call.1} parent=1 // pred_region
      _
    $region25: #{tpu_custom_call.1} parent=1 // pred_fallthru
      _
    // Predicated region
    $region26: #{tpu_custom_call.1} parent=1 // pred_check
      _
    $region27: #{tpu_custom_call.1} parent=1 // pred_check_branch
      %72 = sbr.rel (0) target = $region29
    $region28: #{tpu_custom_call.1} parent=1 // pred_region
      %74 = dma.done [#allocation4], 1024
    $region29: #{tpu_custom_call.1} parent=1 // pred_fallthru
      _
    // Predicated region
    $region30: #{tpu_custom_call.1} parent=1 // pred_check
      _
    $region31: #{tpu_custom_call.1} parent=1 // pred_check_branch
      %76 = sbr.rel (0) target = $region33
    $region32: #{tpu_custom_call.1} parent=1 // pred_region
      %78 = dma.done [#allocation7], 512
    $region33: #{tpu_custom_call.1} parent=1 // pred_fallthru
      _
    // Predicated region
    $region34: #{tpu_custom_call.1} parent=1 // pred_check
      _
    $region35: #{tpu_custom_call.1} parent=1 // pred_check_branch
      %80 = sbr.rel (0) target = $region37
    $region36: #{tpu_custom_call.1} parent=1 // pred_region
      %82 = dma.done [#allocation7], 512
    $region37: #{tpu_custom_call.1} parent=1 // pred_fallthru
      _
    // Predicated region
    $region38: #{tpu_custom_call.1} parent=1 // pred_check
      _
    $region39: #{tpu_custom_call.1} parent=1 // pred_check_branch
      %84 = sbr.rel (0) target = $region41
    $region40: #{tpu_custom_call.1} parent=1 // pred_region
      %86 = dma.done [#allocation10], 512
    $region41: #{tpu_custom_call.1} parent=1 // pred_fallthru
      _
    %v87 = vld [vmem:[#allocation3] sm:$0xff]
    %v88 = vld [vmem:[#allocation3 + $0x8] sm:$0xff]
    %v89 = vld [vmem:[#allocation3 + $0x10] sm:$0xff]
    %v90 = vld [vmem:[#allocation3 + $0x18] sm:$0xff]
    %v91 = vld [vmem:[#allocation3 + $0x20] sm:$0xff]
    %v92 = vld [vmem:[#allocation3 + $0x28] sm:$0xff]
    %v93 = vld [vmem:[#allocation3 + $0x30] sm:$0xff]
    %v94 = vld [vmem:[#allocation3 + $0x38] sm:$0xff]
    %v95 = vld [vmem:[#allocation6] sm:$0xff]
    %v96 = vld [vmem:[#allocation6 + $0x8] sm:$0xff]
    %v97 = vld [vmem:[#allocation6 + $0x10] sm:$0xff]
    %v98 = vld [vmem:[#allocation6 + $0x18] sm:$0xff]
    %v99 = vld [vmem:[%s3] sm:$0x1]
    %v101 = vperm.slane %v99, 0
    %vm103 = vcmask 261120
    %v105 = vsel %vm103, %v87, 0
    %v108 = vsel %vm103, %v88, 0
    %v111 = vsel %vm103, %v89, 0
    %v114 = vsel %vm103, %v90, 0
    %v117 = vsel %vm103, %v91, 0
    %v120 = vsel %vm103, %v92, 0
    %v123 = vsel %vm103, %v93, 0
    %v126 = vsel %vm103, %v94, 0
    %128 = vmatpush.msra.mxu0 0.0
    %129 = vmatpush.msra.mxu0 0.0
    %130 = vmatpush.msra.mxu0 0.0
    %131 = vmatpush.msra.mxu0 0.0
    %132 = vmatpush.msra.mxu0 0.0
    %133 = vmatpush.msra.mxu0 0.0
    %134 = vmatpush.msra.mxu0 0.0
    %135 = vmatpush.msra.mxu0 0.0
    %136 = vmatpush.msra.mxu0 0.0
    %137 = vmatpush.msra.mxu0 0.0
    %138 = vmatpush.msra.mxu0 0.0
    %139 = vmatpush.msra.mxu0 0.0
    %140 = vmatpush.msra.mxu0 %v98
    %141 = vmatpush.msra.mxu0 %v97
    %142 = vmatpush.msra.mxu0 %v96
    %143 = vmatpush.msra.mxu0 %v95
    %144 = vmatmul.f32.gmra.mxu0 %v105
    %v145 = vpop.f32.mrf.mxu0
    %v146 = vadd.f32 %v101, %v145
    %147 = vmatmul.f32.gmra.mxu0 %v108
    %v148 = vpop.f32.mrf.mxu0
    %v149 = vadd.f32 %v101, %v148
    %150 = vmatmul.f32.gmra.mxu0 %v111
    %v151 = vpop.f32.mrf.mxu0
    %v152 = vadd.f32 %v101, %v151
    %153 = vmatmul.f32.gmra.mxu0 %v114
    %v154 = vpop.f32.mrf.mxu0
    %v155 = vadd.f32 %v101, %v154
    %156 = vmatmul.f32.gmra.mxu0 %v117
    %v157 = vpop.f32.mrf.mxu0
    %v158 = vadd.f32 %v101, %v157
    %159 = vmatmul.f32.gmra.mxu0 %v120
    %v160 = vpop.f32.mrf.mxu0
    %v161 = vadd.f32 %v101, %v160
    %162 = vmatmul.f32.gmra.mxu0 %v123
    %v163 = vpop.f32.mrf.mxu0
    %v164 = vadd.f32 %v101, %v163
    %165 = vmatmul.f32.gmra.mxu0 %v126
    %v166 = vpop.f32.mrf.mxu0
    %v167 = vadd.f32 %v101, %v166
    %168 = vdwg.mxu0
    %v169 = vld [vmem:[#allocation8] sm:$0xff]
    %v170 = vld [vmem:[#allocation8 + $0x8] sm:$0xff]
    %v171 = vld [vmem:[#allocation8 + $0x10] sm:$0xff]
    %v172 = vld [vmem:[#allocation8 + $0x18] sm:$0xff]
    %v173 = vlaneseq
    %v174 = vand.u32 %v173, 127
    %vm175 = vcmp.ge.s32.totalorder %v174, 64
    %vm176 = vcmp.lt.s32.totalorder %v174, 96
    %vm177 = vmand %vm175, %vm176
    %v179 = vsel %vm103, 0.0, 0
    %181 = vmatpush.msra.mxu0 0.0
    %182 = vmatpush.msra.mxu0 0.0
    %183 = vmatpush.msra.mxu0 0.0
    %184 = vmatpush.msra.mxu0 0.0
    %185 = vmatpush.msra.mxu0 0.0
    %186 = vmatpush.msra.mxu0 0.0
    %187 = vmatpush.msra.mxu0 0.0
    %188 = vmatpush.msra.mxu0 0.0
    %189 = vmatpush.msra.mxu0 0.0
    %190 = vmatpush.msra.mxu0 0.0
    %191 = vmatpush.msra.mxu0 0.0
    %192 = vmatpush.msra.mxu0 0.0
    %193 = vmatpush.msra.mxu0 %v172
    %194 = vmatpush.msra.mxu0 %v171
    %195 = vmatpush.msra.mxu0 %v170
    %196 = vmatpush.msra.mxu0 %v169
    %197 = vmatmul.f32.gmra.mxu0 %v179
    %v198 = vpop.f32.mrf.mxu0
    %v199 = vadd.f32 0.0, %v198
    %200 = vdwg.mxu0
    %v202 = vrot.slane %v199, 1
    %v203 = vrot.slane %v199, 2
    %v204 = vrot.slane %v199, 3
    %v205 = vrot.slane %v199, 4
    %v206 = vrot.slane %v199, 5
    %v207 = vrot.slane %v199, 6
    %v208 = vrot.slane %v199, 7
    %v217 = vadd.f32 %v146, %v199
    %v218 = vadd.f32 %v149, %v202
    %v219 = vadd.f32 %v152, %v203
    %v220 = vadd.f32 %v155, %v204
    %v221 = vadd.f32 %v158, %v205
    %v222 = vadd.f32 %v161, %v206
    %v223 = vadd.f32 %v164, %v207
    %v224 = vadd.f32 %v167, %v208
    %v225 = vtanh.pop %v217
    %v226 = vtanh.pop %v218
    %v227 = vtanh.pop %v219
    %v228 = vtanh.pop %v220
    %v229 = vtanh.pop %v221
    %v230 = vtanh.pop %v222
    %v231 = vtanh.pop %v223
    %v232 = vtanh.pop %v224
    %v233 = vxor.u32 %v217, 2147483648
    %v234 = vxor.u32 %v218, 2147483648
    %v235 = vxor.u32 %v219, 2147483648
    %v236 = vxor.u32 %v220, 2147483648
    %v237 = vxor.u32 %v221, 2147483648
    %v238 = vxor.u32 %v222, 2147483648
    %v239 = vxor.u32 %v223, 2147483648
    %v240 = vxor.u32 %v224, 2147483648
    %v241 = vmul.f32 %v233, 1.442695
    %v242 = vpow.pop %v241
    %v243 = vmul.f32 %v234, 1.442695
    %v244 = vpow.pop %v243
    %v245 = vmul.f32 %v235, 1.442695
    %v246 = vpow.pop %v245
    %v247 = vmul.f32 %v236, 1.442695
    %v248 = vpow.pop %v247
    %v249 = vmul.f32 %v237, 1.442695
    %v250 = vpow.pop %v249
    %v251 = vmul.f32 %v238, 1.442695
    %v252 = vpow.pop %v251
    %v253 = vmul.f32 %v239, 1.442695
    %v254 = vpow.pop %v253
    %v255 = vmul.f32 %v240, 1.442695
    %v256 = vpow.pop %v255
    %v257 = vadd.f32 %v242, 1.0
    %v258 = vadd.f32 %v244, 1.0
    %v259 = vadd.f32 %v246, 1.0
    %v260 = vadd.f32 %v248, 1.0
    %v261 = vadd.f32 %v250, 1.0
    %v262 = vadd.f32 %v252, 1.0
    %v263 = vadd.f32 %v254, 1.0
    %v264 = vadd.f32 %v256, 1.0
    %v265 = vrcp.pop %v257
    %v266 = vmul.f32 %v257, %v265
    %v267 = vsub.f32 1.0, %v266
    %v268 = vmul.f32 %v265, %v267
    %v269 = vadd.f32 %v265, %v268
    %vm270 = vweird.f32 %v257
    %vm271 = vweird.f32 %v265
    %vm272 = vmor %vm270, %vm271
    %v273 = vsel %vm272, %v265, %v269
    %v274 = vand.u32 2147483647, %v257
    %vm275 = vcmp.eq.f32.partialorder %v274, 8.507059e+37
    %v276 = vand.u32 %v257, 2147483648
    %v277 = vor.u32 1.1754944e-38, %v276
    %v278 = vsel %vm275, %v277, %v273
    %v279 = vmul.f32 1.0, %v278
    %v280 = vrcp.pop %v258
    %v281 = vmul.f32 %v258, %v280
    %v282 = vsub.f32 1.0, %v281
    %v283 = vmul.f32 %v280, %v282
    %v284 = vadd.f32 %v280, %v283
    %vm285 = vweird.f32 %v258
    %vm286 = vweird.f32 %v280
    %vm287 = vmor %vm285, %vm286
    %v288 = vsel %vm287, %v280, %v284
    %v289 = vand.u32 2147483647, %v258
    %vm290 = vcmp.eq.f32.partialorder %v289, 8.507059e+37
    %v291 = vand.u32 %v258, 2147483648
    %v292 = vor.u32 1.1754944e-38, %v291
    %v293 = vsel %vm290, %v292, %v288
    %v294 = vmul.f32 1.0, %v293
    %v295 = vrcp.pop %v259
    %v296 = vmul.f32 %v259, %v295
    %v297 = vsub.f32 1.0, %v296
    %v298 = vmul.f32 %v295, %v297
    %v299 = vadd.f32 %v295, %v298
    %vm300 = vweird.f32 %v259
    %vm301 = vweird.f32 %v295
    %vm302 = vmor %vm300, %vm301
    %v303 = vsel %vm302, %v295, %v299
    %v304 = vand.u32 2147483647, %v259
    %vm305 = vcmp.eq.f32.partialorder %v304, 8.507059e+37
    %v306 = vand.u32 %v259, 2147483648
    %v307 = vor.u32 1.1754944e-38, %v306
    %v308 = vsel %vm305, %v307, %v303
    %v309 = vmul.f32 1.0, %v308
    %v310 = vrcp.pop %v260
    %v311 = vmul.f32 %v260, %v310
    %v312 = vsub.f32 1.0, %v311
    %v313 = vmul.f32 %v310, %v312
    %v314 = vadd.f32 %v310, %v313
    %vm315 = vweird.f32 %v260
    %vm316 = vweird.f32 %v310
    %vm317 = vmor %vm315, %vm316
    %v318 = vsel %vm317, %v310, %v314
    %v319 = vand.u32 2147483647, %v260
    %vm320 = vcmp.eq.f32.partialorder %v319, 8.507059e+37
    %v321 = vand.u32 %v260, 2147483648
    %v322 = vor.u32 1.1754944e-38, %v321
    %v323 = vsel %vm320, %v322, %v318
    %v324 = vmul.f32 1.0, %v323
    %v325 = vrcp.pop %v261
    %v326 = vmul.f32 %v261, %v325
    %v327 = vsub.f32 1.0, %v326
    %v328 = vmul.f32 %v325, %v327
    %v329 = vadd.f32 %v325, %v328
    %vm330 = vweird.f32 %v261
    %vm331 = vweird.f32 %v325
    %vm332 = vmor %vm330, %vm331
    %v333 = vsel %vm332, %v325, %v329
    %v334 = vand.u32 2147483647, %v261
    %vm335 = vcmp.eq.f32.partialorder %v334, 8.507059e+37
    %v336 = vand.u32 %v261, 2147483648
    %v337 = vor.u32 1.1754944e-38, %v336
    %v338 = vsel %vm335, %v337, %v333
    %v339 = vmul.f32 1.0, %v338
    %v340 = vrcp.pop %v262
    %v341 = vmul.f32 %v262, %v340
    %v342 = vsub.f32 1.0, %v341
    %v343 = vmul.f32 %v340, %v342
    %v344 = vadd.f32 %v340, %v343
    %vm345 = vweird.f32 %v262
    %vm346 = vweird.f32 %v340
    %vm347 = vmor %vm345, %vm346
    %v348 = vsel %vm347, %v340, %v344
    %v349 = vand.u32 2147483647, %v262
    %vm350 = vcmp.eq.f32.partialorder %v349, 8.507059e+37
    %v351 = vand.u32 %v262, 2147483648
    %v352 = vor.u32 1.1754944e-38, %v351
    %v353 = vsel %vm350, %v352, %v348
    %v354 = vmul.f32 1.0, %v353
    %v355 = vrcp.pop %v263
    %v356 = vmul.f32 %v263, %v355
    %v357 = vsub.f32 1.0, %v356
    %v358 = vmul.f32 %v355, %v357
    %v359 = vadd.f32 %v355, %v358
    %vm360 = vweird.f32 %v263
    %vm361 = vweird.f32 %v355
    %vm362 = vmor %vm360, %vm361
    %v363 = vsel %vm362, %v355, %v359
    %v364 = vand.u32 2147483647, %v263
    %vm365 = vcmp.eq.f32.partialorder %v364, 8.507059e+37
    %v366 = vand.u32 %v263, 2147483648
    %v367 = vor.u32 1.1754944e-38, %v366
    %v368 = vsel %vm365, %v367, %v363
    %v369 = vmul.f32 1.0, %v368
    %v370 = vrcp.pop %v264
    %v371 = vmul.f32 %v264, %v370
    %v372 = vsub.f32 1.0, %v371
    %v373 = vmul.f32 %v370, %v372
    %v374 = vadd.f32 %v370, %v373
    %vm375 = vweird.f32 %v264
    %vm376 = vweird.f32 %v370
    %vm377 = vmor %vm375, %vm376
    %v378 = vsel %vm377, %v370, %v374
    %v379 = vand.u32 2147483647, %v264
    %vm380 = vcmp.eq.f32.partialorder %v379, 8.507059e+37
    %v381 = vand.u32 %v264, 2147483648
    %v382 = vor.u32 1.1754944e-38, %v381
    %v383 = vsel %vm380, %v382, %v378
    %v384 = vmul.f32 1.0, %v383
    %v393 = vrot.slane %v226, 7
    %vm394 = vcmask 1041409
    %v395 = vsel %vm394, %v393, %v225
    %v396 = vrot.slane %v227, 6
    %vm397 = vcmask 1042434
    %v398 = vsel %vm397, %v396, %v395
    %v399 = vrot.slane %v228, 5
    %vm400 = vcmask 1043459
    %v401 = vsel %vm400, %v399, %v398
    %v402 = vrot.slane %v229, 4
    %vm403 = vcmask 1044484
    %v404 = vsel %vm403, %v402, %v401
    %v405 = vrot.slane %v230, 3
    %vm406 = vcmask 1045509
    %v407 = vsel %vm406, %v405, %v404
    %v408 = vrot.slane %v231, 2
    %vm409 = vcmask 1046534
    %v410 = vsel %vm409, %v408, %v407
    %v411 = vrot.slane %v232, 1
    %vm412 = vcmask 1047559
    %v413 = vsel %vm412, %v411, %v410
    %v423 = vrot.slane %v294, 7
    %v424 = vsel %vm394, %v423, %v279
    %v425 = vrot.slane %v309, 6
    %v426 = vsel %vm397, %v425, %v424
    %v427 = vrot.slane %v324, 5
    %v428 = vsel %vm400, %v427, %v426
    %v429 = vrot.slane %v339, 4
    %v430 = vsel %vm403, %v429, %v428
    %v431 = vrot.slane %v354, 3
    %v432 = vsel %vm406, %v431, %v430
    %v433 = vrot.slane %v369, 2
    %v434 = vsel %vm409, %v433, %v432
    %v435 = vrot.slane %v384, 1
    %v436 = vsel %vm412, %v435, %v434
    %v438 = vsel %vm177, %v413, %v436
    %v439 = vmul.f32 %v438, 0.0
    %441 = vrot.lane.b32.xlu0 %v438, 64
    %v442 = vpop.permute.xlu0 %441
    %v444 = vmul.f32 %v438, %v442
    %446 = vrot.lane.b32.xlu0 %v444, 32
    %v447 = vpop.permute.xlu0 %446
    %v449 = vadd.f32 %v439, %v447
    %v450 = vtanh.pop %v449
    %452 = vrot.lane.b32.xlu0 %v450, 64
    %v453 = vpop.permute.xlu0 %452
    %v455 = vmul.f32 %v438, %v453
    %v457 = vrot.slane %v455, 1
    %v458 = vrot.slane %v455, 2
    %v459 = vrot.slane %v455, 3
    %v460 = vrot.slane %v455, 4
    %v461 = vrot.slane %v455, 5
    %v462 = vrot.slane %v455, 6
    %v463 = vrot.slane %v455, 7
    %v464 = vperm.slane %v455, 0
    %v465 = vperm.slane %v457, 0
    %v466 = vperm.slane %v458, 0
    %v467 = vperm.slane %v459, 0
    %v468 = vperm.slane %v460, 0
    %v469 = vperm.slane %v461, 0
    %v470 = vperm.slane %v462, 0
    %v471 = vperm.slane %v463, 0
    %472 = vrot.lane.b32.xlu0 %v464, 32
    %v473 = vpop.permute.xlu0 %472
    %474 = vrot.lane.b32.xlu0 %v465, 32
    %v475 = vpop.permute.xlu0 %474
    %476 = vrot.lane.b32.xlu0 %v466, 32
    %v477 = vpop.permute.xlu0 %476
    %478 = vrot.lane.b32.xlu0 %v467, 32
    %v479 = vpop.permute.xlu0 %478
    %480 = vrot.lane.b32.xlu0 %v468, 32
    %v481 = vpop.permute.xlu0 %480
    %482 = vrot.lane.b32.xlu0 %v469, 32
    %v483 = vpop.permute.xlu0 %482
    %484 = vrot.lane.b32.xlu0 %v470, 32
    %v485 = vpop.permute.xlu0 %484
    %486 = vrot.lane.b32.xlu0 %v471, 32
    %v487 = vpop.permute.xlu0 %486
    %vm496 = vcmask 253952
    %497 = vst.msk [vmem:[#allocation2] sm:$0x1] %vm496, %v473
    %498 = vst.msk [vmem:[#allocation2 + $0x8] sm:$0x1] %vm496, %v475
    %499 = vst.msk [vmem:[#allocation2 + $0x10] sm:$0x1] %vm496, %v477
    %500 = vst.msk [vmem:[#allocation2 + $0x18] sm:$0x1] %vm496, %v479
    %501 = vst.msk [vmem:[#allocation2 + $0x20] sm:$0x1] %vm496, %v481
    %502 = vst.msk [vmem:[#allocation2 + $0x28] sm:$0x1] %vm496, %v483
    %503 = vst.msk [vmem:[#allocation2 + $0x30] sm:$0x1] %vm496, %v485
    %504 = vst.msk [vmem:[#allocation2 + $0x38] sm:$0x1] %vm496, %v487
    %505 = vrot.lane.b32.xlu0 %v455, 32
    %v506 = vpop.permute.xlu0 %505
    %v507 = vsel %vm103, %v506, 0
    %509 = vmatpush.msra.mxu0 0.0
    %510 = vmatpush.msra.mxu0 0.0
    %511 = vmatpush.msra.mxu0 0.0
    %512 = vmatpush.msra.mxu0 0.0
    %513 = vmatpush.msra.mxu0 0.0
    %514 = vmatpush.msra.mxu0 0.0
    %515 = vmatpush.msra.mxu0 0.0
    %516 = vmatpush.msra.mxu0 0.0
    %517 = vmatpush.msra.mxu0 0.0
    %518 = vmatpush.msra.mxu0 0.0
    %519 = vmatpush.msra.mxu0 0.0
    %520 = vmatpush.msra.mxu0 0.0
    %521 = vmatpush.msra.mxu0 %v172
    %522 = vmatpush.msra.mxu0 %v171
    %523 = vmatpush.msra.mxu0 %v170
    %524 = vmatpush.msra.mxu0 %v169
    %525 = vmatmul.f32.gmra.mxu0 %v507
    %v526 = vpop.f32.mrf.mxu0
    %v527 = vadd.f32 0.0, %v526
    %528 = vdwg.mxu0
    %v530 = vrot.slane %v527, 7
    %v531 = vrot.slane %v527, 1
    %v532 = vrot.slane %v527, 2
    %v533 = vrot.slane %v527, 3
    %v534 = vrot.slane %v527, 4
    %v535 = vrot.slane %v527, 5
    %v536 = vrot.slane %v527, 6
    %v545 = vadd.f32 %v146, %v530
    %v546 = vadd.f32 %v149, %v527
    %v547 = vadd.f32 %v152, %v531
    %v548 = vadd.f32 %v155, %v532
    %v549 = vadd.f32 %v158, %v533
    %v550 = vadd.f32 %v161, %v534
    %v551 = vadd.f32 %v164, %v535
    %v552 = vadd.f32 %v167, %v536
    %v553 = vtanh.pop %v545
    %v554 = vtanh.pop %v546
    %v555 = vtanh.pop %v547
    %v556 = vtanh.pop %v548
    %v557 = vtanh.pop %v549
    %v558 = vtanh.pop %v550
    %v559 = vtanh.pop %v551
    %v560 = vtanh.pop %v552
    %v561 = vxor.u32 %v545, 2147483648
    %v562 = vxor.u32 %v546, 2147483648
    %v563 = vxor.u32 %v547, 2147483648
    %v564 = vxor.u32 %v548, 2147483648
    %v565 = vxor.u32 %v549, 2147483648
    %v566 = vxor.u32 %v550, 2147483648
    %v567 = vxor.u32 %v551, 2147483648
    %v568 = vxor.u32 %v552, 2147483648
    %v569 = vmul.f32 %v561, 1.442695
    %v570 = vpow.pop %v569
    %v571 = vmul.f32 %v562, 1.442695
    %v572 = vpow.pop %v571
    %v573 = vmul.f32 %v563, 1.442695
    %v574 = vpow.pop %v573
    %v575 = vmul.f32 %v564, 1.442695
    %v576 = vpow.pop %v575
    %v577 = vmul.f32 %v565, 1.442695
    %v578 = vpow.pop %v577
    %v579 = vmul.f32 %v566, 1.442695
    %v580 = vpow.pop %v579
    %v581 = vmul.f32 %v567, 1.442695
    %v582 = vpow.pop %v581
    %v583 = vmul.f32 %v568, 1.442695
    %v584 = vpow.pop %v583
    %v585 = vadd.f32 %v570, 1.0
    %v586 = vadd.f32 %v572, 1.0
    %v587 = vadd.f32 %v574, 1.0
    %v588 = vadd.f32 %v576, 1.0
    %v589 = vadd.f32 %v578, 1.0
    %v590 = vadd.f32 %v580, 1.0
    %v591 = vadd.f32 %v582, 1.0
    %v592 = vadd.f32 %v584, 1.0
    %v593 = vrcp.pop %v585
    %v594 = vmul.f32 %v585, %v593
    %v595 = vsub.f32 1.0, %v594
    %v596 = vmul.f32 %v593, %v595
    %v597 = vadd.f32 %v593, %v596
    %vm598 = vweird.f32 %v585
    %vm599 = vweird.f32 %v593
    %vm600 = vmor %vm598, %vm599
    %v601 = vsel %vm600, %v593, %v597
    %v602 = vand.u32 2147483647, %v585
    %vm603 = vcmp.eq.f32.partialorder %v602, 8.507059e+37
    %v604 = vand.u32 %v585, 2147483648
    %v605 = vor.u32 1.1754944e-38, %v604
    %v606 = vsel %vm603, %v605, %v601
    %v607 = vmul.f32 1.0, %v606
    %v608 = vrcp.pop %v586
    %v609 = vmul.f32 %v586, %v608
    %v610 = vsub.f32 1.0, %v609
    %v611 = vmul.f32 %v608, %v610
    %v612 = vadd.f32 %v608, %v611
    %vm613 = vweird.f32 %v586
    %vm614 = vweird.f32 %v608
    %vm615 = vmor %vm613, %vm614
    %v616 = vsel %vm615, %v608, %v612
    %v617 = vand.u32 2147483647, %v586
    %vm618 = vcmp.eq.f32.partialorder %v617, 8.507059e+37
    %v619 = vand.u32 %v586, 2147483648
    %v620 = vor.u32 1.1754944e-38, %v619
    %v621 = vsel %vm618, %v620, %v616
    %v622 = vmul.f32 1.0, %v621
    %v623 = vrcp.pop %v587
    %v624 = vmul.f32 %v587, %v623
    %v625 = vsub.f32 1.0, %v624
    %v626 = vmul.f32 %v623, %v625
    %v627 = vadd.f32 %v623, %v626
    %vm628 = vweird.f32 %v587
    %vm629 = vweird.f32 %v623
    %vm630 = vmor %vm628, %vm629
    %v631 = vsel %vm630, %v623, %v627
    %v632 = vand.u32 2147483647, %v587
    %vm633 = vcmp.eq.f32.partialorder %v632, 8.507059e+37
    %v634 = vand.u32 %v587, 2147483648
    %v635 = vor.u32 1.1754944e-38, %v634
    %v636 = vsel %vm633, %v635, %v631
    %v637 = vmul.f32 1.0, %v636
    %v638 = vrcp.pop %v588
    %v639 = vmul.f32 %v588, %v638
    %v640 = vsub.f32 1.0, %v639
    %v641 = vmul.f32 %v638, %v640
    %v642 = vadd.f32 %v638, %v641
    %vm643 = vweird.f32 %v588
    %vm644 = vweird.f32 %v638
    %vm645 = vmor %vm643, %vm644
    %v646 = vsel %vm645, %v638, %v642
    %v647 = vand.u32 2147483647, %v588
    %vm648 = vcmp.eq.f32.partialorder %v647, 8.507059e+37
    %v649 = vand.u32 %v588, 2147483648
    %v650 = vor.u32 1.1754944e-38, %v649
    %v651 = vsel %vm648, %v650, %v646
    %v652 = vmul.f32 1.0, %v651
    %v653 = vrcp.pop %v589
    %v654 = vmul.f32 %v589, %v653
    %v655 = vsub.f32 1.0, %v654
    %v656 = vmul.f32 %v653, %v655
    %v657 = vadd.f32 %v653, %v656
    %vm658 = vweird.f32 %v589
    %vm659 = vweird.f32 %v653
    %vm660 = vmor %vm658, %vm659
    %v661 = vsel %vm660, %v653, %v657
    %v662 = vand.u32 2147483647, %v589
    %vm663 = vcmp.eq.f32.partialorder %v662, 8.507059e+37
    %v664 = vand.u32 %v589, 2147483648
    %v665 = vor.u32 1.1754944e-38, %v664
    %v666 = vsel %vm663, %v665, %v661
    %v667 = vmul.f32 1.0, %v666
    %v668 = vrcp.pop %v590
    %v669 = vmul.f32 %v590, %v668
    %v670 = vsub.f32 1.0, %v669
    %v671 = vmul.f32 %v668, %v670
    %v672 = vadd.f32 %v668, %v671
    %vm673 = vweird.f32 %v590
    %vm674 = vweird.f32 %v668
    %vm675 = vmor %vm673, %vm674
    %v676 = vsel %vm675, %v668, %v672
    %v677 = vand.u32 2147483647, %v590
    %vm678 = vcmp.eq.f32.partialorder %v677, 8.507059e+37
    %v679 = vand.u32 %v590, 2147483648
    %v680 = vor.u32 1.1754944e-38, %v679
    %v681 = vsel %vm678, %v680, %v676
    %v682 = vmul.f32 1.0, %v681
    %v683 = vrcp.pop %v591
    %v684 = vmul.f32 %v591, %v683
    %v685 = vsub.f32 1.0, %v684
    %v686 = vmul.f32 %v683, %v685
    %v687 = vadd.f32 %v683, %v686
    %vm688 = vweird.f32 %v591
    %vm689 = vweird.f32 %v683
    %vm690 = vmor %vm688, %vm689
    %v691 = vsel %vm690, %v683, %v687
    %v692 = vand.u32 2147483647, %v591
    %vm693 = vcmp.eq.f32.partialorder %v692, 8.507059e+37
    %v694 = vand.u32 %v591, 2147483648
    %v695 = vor.u32 1.1754944e-38, %v694
    %v696 = vsel %vm693, %v695, %v691
    %v697 = vmul.f32 1.0, %v696
    %v698 = vrcp.pop %v592
    %v699 = vmul.f32 %v592, %v698
    %v700 = vsub.f32 1.0, %v699
    %v701 = vmul.f32 %v698, %v700
    %v702 = vadd.f32 %v698, %v701
    %vm703 = vweird.f32 %v592
    %vm704 = vweird.f32 %v698
    %vm705 = vmor %vm703, %vm704
    %v706 = vsel %vm705, %v698, %v702
    %v707 = vand.u32 2147483647, %v592
    %vm708 = vcmp.eq.f32.partialorder %v707, 8.507059e+37
    %v709 = vand.u32 %v592, 2147483648
    %v710 = vor.u32 1.1754944e-38, %v709
    %v711 = vsel %vm708, %v710, %v706
    %v712 = vmul.f32 1.0, %v711
    %v721 = vrot.slane %v553, 1
    %v722 = vsel %vm394, %v554, %v721
    %v723 = vrot.slane %v555, 7
    %v724 = vsel %vm397, %v723, %v722
    %v725 = vrot.slane %v556, 6
    %v726 = vsel %vm400, %v725, %v724
    %v727 = vrot.slane %v557, 5
    %v728 = vsel %vm403, %v727, %v726
    %v729 = vrot.slane %v558, 4
    %v730 = vsel %vm406, %v729, %v728
    %v731 = vrot.slane %v559, 3
    %v732 = vsel %vm409, %v731, %v730
    %v733 = vrot.slane %v560, 2
    %v734 = vsel %vm412, %v733, %v732
    %v744 = vrot.slane %v607, 1
    %v745 = vsel %vm394, %v622, %v744
    %v746 = vrot.slane %v637, 7
    %v747 = vsel %vm397, %v746, %v745
    %v748 = vrot.slane %v652, 6
    %v749 = vsel %vm400, %v748, %v747
    %v750 = vrot.slane %v667, 5
    %v751 = vsel %vm403, %v750, %v749
    %v752 = vrot.slane %v682, 4
    %v753 = vsel %vm406, %v752, %v751
    %v754 = vrot.slane %v697, 3
    %v755 = vsel %vm409, %v754, %v753
    %v756 = vrot.slane %v712, 2
    %v757 = vsel %vm412, %v756, %v755
    %v759 = vsel %vm177, %v734, %v757
    %v760 = vmul.f32 %v759, %v449
    %762 = vrot.lane.b32.xlu0 %v759, 64
    %v763 = vpop.permute.xlu0 %762
    %v765 = vmul.f32 %v759, %v763
    %767 = vrot.lane.b32.xlu0 %v765, 32
    %v768 = vpop.permute.xlu0 %767
    %v770 = vadd.f32 %v760, %v768
    %v771 = vtanh.pop %v770
    %773 = vrot.lane.b32.xlu0 %v771, 64
    %v774 = vpop.permute.xlu0 %773
    %v776 = vmul.f32 %v759, %v774
    %v778 = vrot.slane %v776, 1
    %v779 = vrot.slane %v776, 2
    %v780 = vrot.slane %v776, 3
    %v781 = vrot.slane %v776, 4
    %v782 = vrot.slane %v776, 5
    %v783 = vrot.slane %v776, 6
    %v784 = vrot.slane %v776, 7
    %v785 = vperm.slane %v776, 0
    %v786 = vperm.slane %v778, 0
    %v787 = vperm.slane %v779, 0
    %v788 = vperm.slane %v780, 0
    %v789 = vperm.slane %v781, 0
    %v790 = vperm.slane %v782, 0
    %v791 = vperm.slane %v783, 0
    %v792 = vperm.slane %v784, 0
    %793 = vrot.lane.b32.xlu0 %v785, 32
    %v794 = vpop.permute.xlu0 %793
    %795 = vrot.lane.b32.xlu0 %v786, 32
    %v796 = vpop.permute.xlu0 %795
    %797 = vrot.lane.b32.xlu0 %v787, 32
    %v798 = vpop.permute.xlu0 %797
    %799 = vrot.lane.b32.xlu0 %v788, 32
    %v800 = vpop.permute.xlu0 %799
    %801 = vrot.lane.b32.xlu0 %v789, 32
    %v802 = vpop.permute.xlu0 %801
    %803 = vrot.lane.b32.xlu0 %v790, 32
    %v804 = vpop.permute.xlu0 %803
    %805 = vrot.lane.b32.xlu0 %v791, 32
    %v806 = vpop.permute.xlu0 %805
    %807 = vrot.lane.b32.xlu0 %v792, 32
    %v808 = vpop.permute.xlu0 %807
    %817 = vst.msk [vmem:[#allocation2 + $0x1] sm:$0x1] %vm496, %v794
    %818 = vst.msk [vmem:[#allocation2 + $0x9] sm:$0x1] %vm496, %v796
    %819 = vst.msk [vmem:[#allocation2 + $0x11] sm:$0x1] %vm496, %v798
    %820 = vst.msk [vmem:[#allocation2 + $0x19] sm:$0x1] %vm496, %v800
    %821 = vst.msk [vmem:[#allocation2 + $0x21] sm:$0x1] %vm496, %v802
    %822 = vst.msk [vmem:[#allocation2 + $0x29] sm:$0x1] %vm496, %v804
    %823 = vst.msk [vmem:[#allocation2 + $0x31] sm:$0x1] %vm496, %v806
    %824 = vst.msk [vmem:[#allocation2 + $0x39] sm:$0x1] %vm496, %v808
    %825 = vrot.lane.b32.xlu0 %v776, 32
    %v826 = vpop.permute.xlu0 %825
    %v827 = vsel %vm103, %v826, 0
    %829 = vmatpush.msra.mxu0 0.0
    %830 = vmatpush.msra.mxu0 0.0
    %831 = vmatpush.msra.mxu0 0.0
    %832 = vmatpush.msra.mxu0 0.0
    %833 = vmatpush.msra.mxu0 0.0
    %834 = vmatpush.msra.mxu0 0.0
    %835 = vmatpush.msra.mxu0 0.0
    %836 = vmatpush.msra.mxu0 0.0
    %837 = vmatpush.msra.mxu0 0.0
    %838 = vmatpush.msra.mxu0 0.0
    %839 = vmatpush.msra.mxu0 0.0
    %840 = vmatpush.msra.mxu0 0.0
    %841 = vmatpush.msra.mxu0 %v172
    %842 = vmatpush.msra.mxu0 %v171
    %843 = vmatpush.msra.mxu0 %v170
    %844 = vmatpush.msra.mxu0 %v169
    %845 = vmatmul.f32.gmra.mxu0 %v827
    %v846 = vpop.f32.mrf.mxu0
    %v847 = vadd.f32 0.0, %v846
    %848 = vdwg.mxu0
    %v850 = vrot.slane %v847, 6
    %v851 = vrot.slane %v847, 7
    %v852 = vrot.slane %v847, 1
    %v853 = vrot.slane %v847, 2
    %v854 = vrot.slane %v847, 3
    %v855 = vrot.slane %v847, 4
    %v856 = vrot.slane %v847, 5
    %v865 = vadd.f32 %v146, %v850
    %v866 = vadd.f32 %v149, %v851
    %v867 = vadd.f32 %v152, %v847
    %v868 = vadd.f32 %v155, %v852
    %v869 = vadd.f32 %v158, %v853
    %v870 = vadd.f32 %v161, %v854
    %v871 = vadd.f32 %v164, %v855
    %v872 = vadd.f32 %v167, %v856
    %v873 = vtanh.pop %v865
    %v874 = vtanh.pop %v866
    %v875 = vtanh.pop %v867
    %v876 = vtanh.pop %v868
    %v877 = vtanh.pop %v869
    %v878 = vtanh.pop %v870
    %v879 = vtanh.pop %v871
    %v880 = vtanh.pop %v872
    %v881 = vxor.u32 %v865, 2147483648
    %v882 = vxor.u32 %v866, 2147483648
    %v883 = vxor.u32 %v867, 2147483648
    %v884 = vxor.u32 %v868, 2147483648
    %v885 = vxor.u32 %v869, 2147483648
    %v886 = vxor.u32 %v870, 2147483648
    %v887 = vxor.u32 %v871, 2147483648
    %v888 = vxor.u32 %v872, 2147483648
    %v889 = vmul.f32 %v881, 1.442695
    %v890 = vpow.pop %v889
    %v891 = vmul.f32 %v882, 1.442695
    %v892 = vpow.pop %v891
    %v893 = vmul.f32 %v883, 1.442695
    %v894 = vpow.pop %v893
    %v895 = vmul.f32 %v884, 1.442695
    %v896 = vpow.pop %v895
    %v897 = vmul.f32 %v885, 1.442695
    %v898 = vpow.pop %v897
    %v899 = vmul.f32 %v886, 1.442695
    %v900 = vpow.pop %v899
    %v901 = vmul.f32 %v887, 1.442695
    %v902 = vpow.pop %v901
    %v903 = vmul.f32 %v888, 1.442695
    %v904 = vpow.pop %v903
    %v905 = vadd.f32 %v890, 1.0
    %v906 = vadd.f32 %v892, 1.0
    %v907 = vadd.f32 %v894, 1.0
    %v908 = vadd.f32 %v896, 1.0
    %v909 = vadd.f32 %v898, 1.0
    %v910 = vadd.f32 %v900, 1.0
    %v911 = vadd.f32 %v902, 1.0
    %v912 = vadd.f32 %v904, 1.0
    %v913 = vrcp.pop %v905
    %v914 = vmul.f32 %v905, %v913
    %v915 = vsub.f32 1.0, %v914
    %v916 = vmul.f32 %v913, %v915
    %v917 = vadd.f32 %v913, %v916
    %vm918 = vweird.f32 %v905
    %vm919 = vweird.f32 %v913
    %vm920 = vmor %vm918, %vm919
    %v921 = vsel %vm920, %v913, %v917
    %v922 = vand.u32 2147483647, %v905
    %vm923 = vcmp.eq.f32.partialorder %v922, 8.507059e+37
    %v924 = vand.u32 %v905, 2147483648
    %v925 = vor.u32 1.1754944e-38, %v924
    %v926 = vsel %vm923, %v925, %v921
    %v927 = vmul.f32 1.0, %v926
    %v928 = vrcp.pop %v906
    %v929 = vmul.f32 %v906, %v928
    %v930 = vsub.f32 1.0, %v929
    %v931 = vmul.f32 %v928, %v930
    %v932 = vadd.f32 %v928, %v931
    %vm933 = vweird.f32 %v906
    %vm934 = vweird.f32 %v928
    %vm935 = vmor %vm933, %vm934
    %v936 = vsel %vm935, %v928, %v932
    %v937 = vand.u32 2147483647, %v906
    %vm938 = vcmp.eq.f32.partialorder %v937, 8.507059e+37
    %v939 = vand.u32 %v906, 2147483648
    %v940 = vor.u32 1.1754944e-38, %v939
    %v941 = vsel %vm938, %v940, %v936
    %v942 = vmul.f32 1.0, %v941
    %v943 = vrcp.pop %v907
    %v944 = vmul.f32 %v907, %v943
    %v945 = vsub.f32 1.0, %v944
    %v946 = vmul.f32 %v943, %v945
    %v947 = vadd.f32 %v943, %v946
    %vm948 = vweird.f32 %v907
    %vm949 = vweird.f32 %v943
    %vm950 = vmor %vm948, %vm949
    %v951 = vsel %vm950, %v943, %v947
    %v952 = vand.u32 2147483647, %v907
    %vm953 = vcmp.eq.f32.partialorder %v952, 8.507059e+37
    %v954 = vand.u32 %v907, 2147483648
    %v955 = vor.u32 1.1754944e-38, %v954
    %v956 = vsel %vm953, %v955, %v951
    %v957 = vmul.f32 1.0, %v956
    %v958 = vrcp.pop %v908
    %v959 = vmul.f32 %v908, %v958
    %v960 = vsub.f32 1.0, %v959
    %v961 = vmul.f32 %v958, %v960
    %v962 = vadd.f32 %v958, %v961
    %vm963 = vweird.f32 %v908
    %vm964 = vweird.f32 %v958
    %vm965 = vmor %vm963, %vm964
    %v966 = vsel %vm965, %v958, %v962
    %v967 = vand.u32 2147483647, %v908
    %vm968 = vcmp.eq.f32.partialorder %v967, 8.507059e+37
    %v969 = vand.u32 %v908, 2147483648
    %v970 = vor.u32 1.1754944e-38, %v969
    %v971 = vsel %vm968, %v970, %v966
    %v972 = vmul.f32 1.0, %v971
    %v973 = vrcp.pop %v909
    %v974 = vmul.f32 %v909, %v973
    %v975 = vsub.f32 1.0, %v974
    %v976 = vmul.f32 %v973, %v975
    %v977 = vadd.f32 %v973, %v976
    %vm978 = vweird.f32 %v909
    %vm979 = vweird.f32 %v973
    %vm980 = vmor %vm978, %vm979
    %v981 = vsel %vm980, %v973, %v977
    %v982 = vand.u32 2147483647, %v909
    %vm983 = vcmp.eq.f32.partialorder %v982, 8.507059e+37
    %v984 = vand.u32 %v909, 2147483648
    %v985 = vor.u32 1.1754944e-38, %v984
    %v986 = vsel %vm983, %v985, %v981
    %v987 = vmul.f32 1.0, %v986
    %v988 = vrcp.pop %v910
    %v989 = vmul.f32 %v910, %v988
    %v990 = vsub.f32 1.0, %v989
    %v991 = vmul.f32 %v988, %v990
    %v992 = vadd.f32 %v988, %v991
    %vm993 = vweird.f32 %v910
    %vm994 = vweird.f32 %v988
    %vm995 = vmor %vm993, %vm994
    %v996 = vsel %vm995, %v988, %v992
    %v997 = vand.u32 2147483647, %v910
    %vm998 = vcmp.eq.f32.partialorder %v997, 8.507059e+37
    %v999 = vand.u32 %v910, 2147483648
    %v1000 = vor.u32 1.1754944e-38, %v999
    %v1001 = vsel %vm998, %v1000, %v996
    %v1002 = vmul.f32 1.0, %v1001
    %v1003 = vrcp.pop %v911
    %v1004 = vmul.f32 %v911, %v1003
    %v1005 = vsub.f32 1.0, %v1004
    %v1006 = vmul.f32 %v1003, %v1005
    %v1007 = vadd.f32 %v1003, %v1006
    %vm1008 = vweird.f32 %v911
    %vm1009 = vweird.f32 %v1003
    %vm1010 = vmor %vm1008, %vm1009
    %v1011 = vsel %vm1010, %v1003, %v1007
    %v1012 = vand.u32 2147483647, %v911
    %vm1013 = vcmp.eq.f32.partialorder %v1012, 8.507059e+37
    %v1014 = vand.u32 %v911, 2147483648
    %v1015 = vor.u32 1.1754944e-38, %v1014
    %v1016 = vsel %vm1013, %v1015, %v1011
    %v1017 = vmul.f32 1.0, %v1016
    %v1018 = vrcp.pop %v912
    %v1019 = vmul.f32 %v912, %v1018
    %v1020 = vsub.f32 1.0, %v1019
    %v1021 = vmul.f32 %v1018, %v1020
    %v1022 = vadd.f32 %v1018, %v1021
    %vm1023 = vweird.f32 %v912
    %vm1024 = vweird.f32 %v1018
    %vm1025 = vmor %vm1023, %vm1024
    %v1026 = vsel %vm1025, %v1018, %v1022
    %v1027 = vand.u32 2147483647, %v912
    %vm1028 = vcmp.eq.f32.partialorder %v1027, 8.507059e+37
    %v1029 = vand.u32 %v912, 2147483648
    %v1030 = vor.u32 1.1754944e-38, %v1029
    %v1031 = vsel %vm1028, %v1030, %v1026
    %v1032 = vmul.f32 1.0, %v1031
    %v1041 = vrot.slane %v873, 2
    %v1042 = vrot.slane %v874, 1
    %v1043 = vsel %vm394, %v1042, %v1041
    %v1044 = vsel %vm397, %v875, %v1043
    %v1045 = vrot.slane %v876, 7
    %v1046 = vsel %vm400, %v1045, %v1044
    %v1047 = vrot.slane %v877, 6
    %v1048 = vsel %vm403, %v1047, %v1046
    %v1049 = vrot.slane %v878, 5
    %v1050 = vsel %vm406, %v1049, %v1048
    %v1051 = vrot.slane %v879, 4
    %v1052 = vsel %vm409, %v1051, %v1050
    %v1053 = vrot.slane %v880, 3
    %v1054 = vsel %vm412, %v1053, %v1052
    %v1064 = vrot.slane %v927, 2
    %v1065 = vrot.slane %v942, 1
    %v1066 = vsel %vm394, %v1065, %v1064
    %v1067 = vsel %vm397, %v957, %v1066
    %v1068 = vrot.slane %v972, 7
    %v1069 = vsel %vm400, %v1068, %v1067
    %v1070 = vrot.slane %v987, 6
    %v1071 = vsel %vm403, %v1070, %v1069
    %v1072 = vrot.slane %v1002, 5
    %v1073 = vsel %vm406, %v1072, %v1071
    %v1074 = vrot.slane %v1017, 4
    %v1075 = vsel %vm409, %v1074, %v1073
    %v1076 = vrot.slane %v1032, 3
    %v1077 = vsel %vm412, %v1076, %v1075
    %v1079 = vsel %vm177, %v1054, %v1077
    %v1080 = vmul.f32 %v1079, %v770
    %1082 = vrot.lane.b32.xlu0 %v1079, 64
    %v1083 = vpop.permute.xlu0 %1082
    %v1085 = vmul.f32 %v1079, %v1083
    %1087 = vrot.lane.b32.xlu0 %v1085, 32
    %v1088 = vpop.permute.xlu0 %1087
    %v1090 = vadd.f32 %v1080, %v1088
    %v1091 = vtanh.pop %v1090
    %1093 = vrot.lane.b32.xlu0 %v1091, 64
    %v1094 = vpop.permute.xlu0 %1093
    %v1096 = vmul.f32 %v1079, %v1094
    %v1098 = vrot.slane %v1096, 1
    %v1099 = vrot.slane %v1096, 2
    %v1100 = vrot.slane %v1096, 3
    %v1101 = vrot.slane %v1096, 4
    %v1102 = vrot.slane %v1096, 5
    %v1103 = vrot.slane %v1096, 6
    %v1104 = vrot.slane %v1096, 7
    %v1105 = vperm.slane %v1096, 0
    %v1106 = vperm.slane %v1098, 0
    %v1107 = vperm.slane %v1099, 0
    %v1108 = vperm.slane %v1100, 0
    %v1109 = vperm.slane %v1101, 0
    %v1110 = vperm.slane %v1102, 0
    %v1111 = vperm.slane %v1103, 0
    %v1112 = vperm.slane %v1104, 0
    %1113 = vrot.lane.b32.xlu0 %v1105, 32
    %v1114 = vpop.permute.xlu0 %1113
    %1115 = vrot.lane.b32.xlu0 %v1106, 32
    %v1116 = vpop.permute.xlu0 %1115
    %1117 = vrot.lane.b32.xlu0 %v1107, 32
    %v1118 = vpop.permute.xlu0 %1117
    %1119 = vrot.lane.b32.xlu0 %v1108, 32
    %v1120 = vpop.permute.xlu0 %1119
    %1121 = vrot.lane.b32.xlu0 %v1109, 32
    %v1122 = vpop.permute.xlu0 %1121
    %1123 = vrot.lane.b32.xlu0 %v1110, 32
    %v1124 = vpop.permute.xlu0 %1123
    %1125 = vrot.lane.b32.xlu0 %v1111, 32
    %v1126 = vpop.permute.xlu0 %1125
    %1127 = vrot.lane.b32.xlu0 %v1112, 32
    %v1128 = vpop.permute.xlu0 %1127
    %1137 = vst.msk [vmem:[#allocation2 + $0x2] sm:$0x1] %vm496, %v1114
    %1138 = vst.msk [vmem:[#allocation2 + $0xa] sm:$0x1] %vm496, %v1116
    %1139 = vst.msk [vmem:[#allocation2 + $0x12] sm:$0x1] %vm496, %v1118
    %1140 = vst.msk [vmem:[#allocation2 + $0x1a] sm:$0x1] %vm496, %v1120
    %1141 = vst.msk [vmem:[#allocation2 + $0x22] sm:$0x1] %vm496, %v1122
    %1142 = vst.msk [vmem:[#allocation2 + $0x2a] sm:$0x1] %vm496, %v1124
    %1143 = vst.msk [vmem:[#allocation2 + $0x32] sm:$0x1] %vm496, %v1126
    %1144 = vst.msk [vmem:[#allocation2 + $0x3a] sm:$0x1] %vm496, %v1128
    %1145 = vrot.lane.b32.xlu0 %v1096, 32
    %v1146 = vpop.permute.xlu0 %1145
    %v1147 = vsel %vm103, %v1146, 0
    %1149 = vmatpush.msra.mxu0 0.0
    %1150 = vmatpush.msra.mxu0 0.0
    %1151 = vmatpush.msra.mxu0 0.0
    %1152 = vmatpush.msra.mxu0 0.0
    %1153 = vmatpush.msra.mxu0 0.0
    %1154 = vmatpush.msra.mxu0 0.0
    %1155 = vmatpush.msra.mxu0 0.0
    %1156 = vmatpush.msra.mxu0 0.0
    %1157 = vmatpush.msra.mxu0 0.0
    %1158 = vmatpush.msra.mxu0 0.0
    %1159 = vmatpush.msra.mxu0 0.0
    %1160 = vmatpush.msra.mxu0 0.0
    %1161 = vmatpush.msra.mxu0 %v172
    %1162 = vmatpush.msra.mxu0 %v171
    %1163 = vmatpush.msra.mxu0 %v170
    %1164 = vmatpush.msra.mxu0 %v169
    %1165 = vmatmul.f32.gmra.mxu0 %v1147
    %v1166 = vpop.f32.mrf.mxu0
    %v1167 = vadd.f32 0.0, %v1166
    %1168 = vdwg.mxu0
    %v1170 = vrot.slane %v1167, 5
    %v1171 = vrot.slane %v1167, 6
    %v1172 = vrot.slane %v1167, 7
    %v1173 = vrot.slane %v1167, 1
    %v1174 = vrot.slane %v1167, 2
    %v1175 = vrot.slane %v1167, 3
    %v1176 = vrot.slane %v1167, 4
    %v1185 = vadd.f32 %v146, %v1170
    %v1186 = vadd.f32 %v149, %v1171
    %v1187 = vadd.f32 %v152, %v1172
    %v1188 = vadd.f32 %v155, %v1167
    %v1189 = vadd.f32 %v158, %v1173
    %v1190 = vadd.f32 %v161, %v1174
    %v1191 = vadd.f32 %v164, %v1175
    %v1192 = vadd.f32 %v167, %v1176
    %v1193 = vtanh.pop %v1185
    %v1194 = vtanh.pop %v1186
    %v1195 = vtanh.pop %v1187
    %v1196 = vtanh.pop %v1188
    %v1197 = vtanh.pop %v1189
    %v1198 = vtanh.pop %v1190
    %v1199 = vtanh.pop %v1191
    %v1200 = vtanh.pop %v1192
    %v1201 = vxor.u32 %v1185, 2147483648
    %v1202 = vxor.u32 %v1186, 2147483648
    %v1203 = vxor.u32 %v1187, 2147483648
    %v1204 = vxor.u32 %v1188, 2147483648
    %v1205 = vxor.u32 %v1189, 2147483648
    %v1206 = vxor.u32 %v1190, 2147483648
    %v1207 = vxor.u32 %v1191, 2147483648
    %v1208 = vxor.u32 %v1192, 2147483648
    %v1209 = vmul.f32 %v1201, 1.442695
    %v1210 = vpow.pop %v1209
    %v1211 = vmul.f32 %v1202, 1.442695
    %v1212 = vpow.pop %v1211
    %v1213 = vmul.f32 %v1203, 1.442695
    %v1214 = vpow.pop %v1213
    %v1215 = vmul.f32 %v1204, 1.442695
    %v1216 = vpow.pop %v1215
    %v1217 = vmul.f32 %v1205, 1.442695
    %v1218 = vpow.pop %v1217
    %v1219 = vmul.f32 %v1206, 1.442695
    %v1220 = vpow.pop %v1219
    %v1221 = vmul.f32 %v1207, 1.442695
    %v1222 = vpow.pop %v1221
    %v1223 = vmul.f32 %v1208, 1.442695
    %v1224 = vpow.pop %v1223
    %v1225 = vadd.f32 %v1210, 1.0
    %v1226 = vadd.f32 %v1212, 1.0
    %v1227 = vadd.f32 %v1214, 1.0
    %v1228 = vadd.f32 %v1216, 1.0
    %v1229 = vadd.f32 %v1218, 1.0
    %v1230 = vadd.f32 %v1220, 1.0
    %v1231 = vadd.f32 %v1222, 1.0
    %v1232 = vadd.f32 %v1224, 1.0
    %v1233 = vrcp.pop %v1225
    %v1234 = vmul.f32 %v1225, %v1233
    %v1235 = vsub.f32 1.0, %v1234
    %v1236 = vmul.f32 %v1233, %v1235
    %v1237 = vadd.f32 %v1233, %v1236
    %vm1238 = vweird.f32 %v1225
    %vm1239 = vweird.f32 %v1233
    %vm1240 = vmor %vm1238, %vm1239
    %v1241 = vsel %vm1240, %v1233, %v1237
    %v1242 = vand.u32 2147483647, %v1225
    %vm1243 = vcmp.eq.f32.partialorder %v1242, 8.507059e+37
    %v1244 = vand.u32 %v1225, 2147483648
    %v1245 = vor.u32 1.1754944e-38, %v1244
    %v1246 = vsel %vm1243, %v1245, %v1241
    %v1247 = vmul.f32 1.0, %v1246
    %v1248 = vrcp.pop %v1226
    %v1249 = vmul.f32 %v1226, %v1248
    %v1250 = vsub.f32 1.0, %v1249
    %v1251 = vmul.f32 %v1248, %v1250
    %v1252 = vadd.f32 %v1248, %v1251
    %vm1253 = vweird.f32 %v1226
    %vm1254 = vweird.f32 %v1248
    %vm1255 = vmor %vm1253, %vm1254
    %v1256 = vsel %vm1255, %v1248, %v1252
    %v1257 = vand.u32 2147483647, %v1226
    %vm1258 = vcmp.eq.f32.partialorder %v1257, 8.507059e+37
    %v1259 = vand.u32 %v1226, 2147483648
    %v1260 = vor.u32 1.1754944e-38, %v1259
    %v1261 = vsel %vm1258, %v1260, %v1256
    %v1262 = vmul.f32 1.0, %v1261
    %v1263 = vrcp.pop %v1227
    %v1264 = vmul.f32 %v1227, %v1263
    %v1265 = vsub.f32 1.0, %v1264
    %v1266 = vmul.f32 %v1263, %v1265
    %v1267 = vadd.f32 %v1263, %v1266
    %vm1268 = vweird.f32 %v1227
    %vm1269 = vweird.f32 %v1263
    %vm1270 = vmor %vm1268, %vm1269
    %v1271 = vsel %vm1270, %v1263, %v1267
    %v1272 = vand.u32 2147483647, %v1227
    %vm1273 = vcmp.eq.f32.partialorder %v1272, 8.507059e+37
    %v1274 = vand.u32 %v1227, 2147483648
    %v1275 = vor.u32 1.1754944e-38, %v1274
    %v1276 = vsel %vm1273, %v1275, %v1271
    %v1277 = vmul.f32 1.0, %v1276
    %v1278 = vrcp.pop %v1228
    %v1279 = vmul.f32 %v1228, %v1278
    %v1280 = vsub.f32 1.0, %v1279
    %v1281 = vmul.f32 %v1278, %v1280
    %v1282 = vadd.f32 %v1278, %v1281
    %vm1283 = vweird.f32 %v1228
    %vm1284 = vweird.f32 %v1278
    %vm1285 = vmor %vm1283, %vm1284
    %v1286 = vsel %vm1285, %v1278, %v1282
    %v1287 = vand.u32 2147483647, %v1228
    %vm1288 = vcmp.eq.f32.partialorder %v1287, 8.507059e+37
    %v1289 = vand.u32 %v1228, 2147483648
    %v1290 = vor.u32 1.1754944e-38, %v1289
    %v1291 = vsel %vm1288, %v1290, %v1286
    %v1292 = vmul.f32 1.0, %v1291
    %v1293 = vrcp.pop %v1229
    %v1294 = vmul.f32 %v1229, %v1293
    %v1295 = vsub.f32 1.0, %v1294
    %v1296 = vmul.f32 %v1293, %v1295
    %v1297 = vadd.f32 %v1293, %v1296
    %vm1298 = vweird.f32 %v1229
    %vm1299 = vweird.f32 %v1293
    %vm1300 = vmor %vm1298, %vm1299
    %v1301 = vsel %vm1300, %v1293, %v1297
    %v1302 = vand.u32 2147483647, %v1229
    %vm1303 = vcmp.eq.f32.partialorder %v1302, 8.507059e+37
    %v1304 = vand.u32 %v1229, 2147483648
    %v1305 = vor.u32 1.1754944e-38, %v1304
    %v1306 = vsel %vm1303, %v1305, %v1301
    %v1307 = vmul.f32 1.0, %v1306
    %v1308 = vrcp.pop %v1230
    %v1309 = vmul.f32 %v1230, %v1308
    %v1310 = vsub.f32 1.0, %v1309
    %v1311 = vmul.f32 %v1308, %v1310
    %v1312 = vadd.f32 %v1308, %v1311
    %vm1313 = vweird.f32 %v1230
    %vm1314 = vweird.f32 %v1308
    %vm1315 = vmor %vm1313, %vm1314
    %v1316 = vsel %vm1315, %v1308, %v1312
    %v1317 = vand.u32 2147483647, %v1230
    %vm1318 = vcmp.eq.f32.partialorder %v1317, 8.507059e+37
    %v1319 = vand.u32 %v1230, 2147483648
    %v1320 = vor.u32 1.1754944e-38, %v1319
    %v1321 = vsel %vm1318, %v1320, %v1316
    %v1322 = vmul.f32 1.0, %v1321
    %v1323 = vrcp.pop %v1231
    %v1324 = vmul.f32 %v1231, %v1323
    %v1325 = vsub.f32 1.0, %v1324
    %v1326 = vmul.f32 %v1323, %v1325
    %v1327 = vadd.f32 %v1323, %v1326
    %vm1328 = vweird.f32 %v1231
    %vm1329 = vweird.f32 %v1323
    %vm1330 = vmor %vm1328, %vm1329
    %v1331 = vsel %vm1330, %v1323, %v1327
    %v1332 = vand.u32 2147483647, %v1231
    %vm1333 = vcmp.eq.f32.partialorder %v1332, 8.507059e+37
    %v1334 = vand.u32 %v1231, 2147483648
    %v1335 = vor.u32 1.1754944e-38, %v1334
    %v1336 = vsel %vm1333, %v1335, %v1331
    %v1337 = vmul.f32 1.0, %v1336
    %v1338 = vrcp.pop %v1232
    %v1339 = vmul.f32 %v1232, %v1338
    %v1340 = vsub.f32 1.0, %v1339
    %v1341 = vmul.f32 %v1338, %v1340
    %v1342 = vadd.f32 %v1338, %v1341
    %vm1343 = vweird.f32 %v1232
    %vm1344 = vweird.f32 %v1338
    %vm1345 = vmor %vm1343, %vm1344
    %v1346 = vsel %vm1345, %v1338, %v1342
    %v1347 = vand.u32 2147483647, %v1232
    %vm1348 = vcmp.eq.f32.partialorder %v1347, 8.507059e+37
    %v1349 = vand.u32 %v1232, 2147483648
    %v1350 = vor.u32 1.1754944e-38, %v1349
    %v1351 = vsel %vm1348, %v1350, %v1346
    %v1352 = vmul.f32 1.0, %v1351
    %v1361 = vrot.slane %v1193, 3
    %v1362 = vrot.slane %v1194, 2
    %v1363 = vsel %vm394, %v1362, %v1361
    %v1364 = vrot.slane %v1195, 1
    %v1365 = vsel %vm397, %v1364, %v1363
    %v1366 = vsel %vm400, %v1196, %v1365
    %v1367 = vrot.slane %v1197, 7
    %v1368 = vsel %vm403, %v1367, %v1366
    %v1369 = vrot.slane %v1198, 6
    %v1370 = vsel %vm406, %v1369, %v1368
    %v1371 = vrot.slane %v1199, 5
    %v1372 = vsel %vm409, %v1371, %v1370
    %v1373 = vrot.slane %v1200, 4
    %v1374 = vsel %vm412, %v1373, %v1372
    %v1384 = vrot.slane %v1247, 3
    %v1385 = vrot.slane %v1262, 2
    %v1386 = vsel %vm394, %v1385, %v1384
    %v1387 = vrot.slane %v1277, 1
    %v1388 = vsel %vm397, %v1387, %v1386
    %v1389 = vsel %vm400, %v1292, %v1388
    %v1390 = vrot.slane %v1307, 7
    %v1391 = vsel %vm403, %v1390, %v1389
    %v1392 = vrot.slane %v1322, 6
    %v1393 = vsel %vm406, %v1392, %v1391
    %v1394 = vrot.slane %v1337, 5
    %v1395 = vsel %vm409, %v1394, %v1393
    %v1396 = vrot.slane %v1352, 4
    %v1397 = vsel %vm412, %v1396, %v1395
    %v1399 = vsel %vm177, %v1374, %v1397
    %v1400 = vmul.f32 %v1399, %v1090
    %1402 = vrot.lane.b32.xlu0 %v1399, 64
    %v1403 = vpop.permute.xlu0 %1402
    %v1405 = vmul.f32 %v1399, %v1403
    %1407 = vrot.lane.b32.xlu0 %v1405, 32
    %v1408 = vpop.permute.xlu0 %1407
    %v1410 = vadd.f32 %v1400, %v1408
    %v1411 = vtanh.pop %v1410
    %1413 = vrot.lane.b32.xlu0 %v1411, 64
    %v1414 = vpop.permute.xlu0 %1413
    %v1416 = vmul.f32 %v1399, %v1414
    %v1418 = vrot.slane %v1416, 1
    %v1419 = vrot.slane %v1416, 2
    %v1420 = vrot.slane %v1416, 3
    %v1421 = vrot.slane %v1416, 4
    %v1422 = vrot.slane %v1416, 5
    %v1423 = vrot.slane %v1416, 6
    %v1424 = vrot.slane %v1416, 7
    %v1425 = vperm.slane %v1416, 0
    %v1426 = vperm.slane %v1418, 0
    %v1427 = vperm.slane %v1419, 0
    %v1428 = vperm.slane %v1420, 0
    %v1429 = vperm.slane %v1421, 0
    %v1430 = vperm.slane %v1422, 0
    %v1431 = vperm.slane %v1423, 0
    %v1432 = vperm.slane %v1424, 0
    %1433 = vrot.lane.b32.xlu0 %v1425, 32
    %v1434 = vpop.permute.xlu0 %1433
    %1435 = vrot.lane.b32.xlu0 %v1426, 32
    %v1436 = vpop.permute.xlu0 %1435
    %1437 = vrot.lane.b32.xlu0 %v1427, 32
    %v1438 = vpop.permute.xlu0 %1437
    %1439 = vrot.lane.b32.xlu0 %v1428, 32
    %v1440 = vpop.permute.xlu0 %1439
    %1441 = vrot.lane.b32.xlu0 %v1429, 32
    %v1442 = vpop.permute.xlu0 %1441
    %1443 = vrot.lane.b32.xlu0 %v1430, 32
    %v1444 = vpop.permute.xlu0 %1443
    %1445 = vrot.lane.b32.xlu0 %v1431, 32
    %v1446 = vpop.permute.xlu0 %1445
    %1447 = vrot.lane.b32.xlu0 %v1432, 32
    %v1448 = vpop.permute.xlu0 %1447
    %1457 = vst.msk [vmem:[#allocation2 + $0x3] sm:$0x1] %vm496, %v1434
    %1458 = vst.msk [vmem:[#allocation2 + $0xb] sm:$0x1] %vm496, %v1436
    %1459 = vst.msk [vmem:[#allocation2 + $0x13] sm:$0x1] %vm496, %v1438
    %1460 = vst.msk [vmem:[#allocation2 + $0x1b] sm:$0x1] %vm496, %v1440
    %1461 = vst.msk [vmem:[#allocation2 + $0x23] sm:$0x1] %vm496, %v1442
    %1462 = vst.msk [vmem:[#allocation2 + $0x2b] sm:$0x1] %vm496, %v1444
    %1463 = vst.msk [vmem:[#allocation2 + $0x33] sm:$0x1] %vm496, %v1446
    %1464 = vst.msk [vmem:[#allocation2 + $0x3b] sm:$0x1] %vm496, %v1448
    %1465 = vrot.lane.b32.xlu0 %v1416, 32
    %v1466 = vpop.permute.xlu0 %1465
    %v1467 = vsel %vm103, %v1466, 0
    %1469 = vmatpush.msra.mxu0 0.0
    %1470 = vmatpush.msra.mxu0 0.0
    %1471 = vmatpush.msra.mxu0 0.0
    %1472 = vmatpush.msra.mxu0 0.0
    %1473 = vmatpush.msra.mxu0 0.0
    %1474 = vmatpush.msra.mxu0 0.0
    %1475 = vmatpush.msra.mxu0 0.0
    %1476 = vmatpush.msra.mxu0 0.0
    %1477 = vmatpush.msra.mxu0 0.0
    %1478 = vmatpush.msra.mxu0 0.0
    %1479 = vmatpush.msra.mxu0 0.0
    %1480 = vmatpush.msra.mxu0 0.0
    %1481 = vmatpush.msra.mxu0 %v172
    %1482 = vmatpush.msra.mxu0 %v171
    %1483 = vmatpush.msra.mxu0 %v170
    %1484 = vmatpush.msra.mxu0 %v169
    %1485 = vmatmul.f32.gmra.mxu0 %v1467
    %v1486 = vpop.f32.mrf.mxu0
    %v1487 = vadd.f32 0.0, %v1486
    %1488 = vdwg.mxu0
    %v1490 = vrot.slane %v1487, 4
    %v1491 = vrot.slane %v1487, 5
    %v1492 = vrot.slane %v1487, 6
    %v1493 = vrot.slane %v1487, 7
    %v1494 = vrot.slane %v1487, 1
    %v1495 = vrot.slane %v1487, 2
    %v1496 = vrot.slane %v1487, 3
    %v1505 = vadd.f32 %v146, %v1490
    %v1506 = vadd.f32 %v149, %v1491
    %v1507 = vadd.f32 %v152, %v1492
    %v1508 = vadd.f32 %v155, %v1493
    %v1509 = vadd.f32 %v158, %v1487
    %v1510 = vadd.f32 %v161, %v1494
    %v1511 = vadd.f32 %v164, %v1495
    %v1512 = vadd.f32 %v167, %v1496
    %v1513 = vtanh.pop %v1505
    %v1514 = vtanh.pop %v1506
    %v1515 = vtanh.pop %v1507
    %v1516 = vtanh.pop %v1508
    %v1517 = vtanh.pop %v1509
    %v1518 = vtanh.pop %v1510
    %v1519 = vtanh.pop %v1511
    %v1520 = vtanh.pop %v1512
    %v1521 = vxor.u32 %v1505, 2147483648
    %v1522 = vxor.u32 %v1506, 2147483648
    %v1523 = vxor.u32 %v1507, 2147483648
    %v1524 = vxor.u32 %v1508, 2147483648
    %v1525 = vxor.u32 %v1509, 2147483648
    %v1526 = vxor.u32 %v1510, 2147483648
    %v1527 = vxor.u32 %v1511, 2147483648
    %v1528 = vxor.u32 %v1512, 2147483648
    %v1529 = vmul.f32 %v1521, 1.442695
    %v1530 = vpow.pop %v1529
    %v1531 = vmul.f32 %v1522, 1.442695
    %v1532 = vpow.pop %v1531
    %v1533 = vmul.f32 %v1523, 1.442695
    %v1534 = vpow.pop %v1533
    %v1535 = vmul.f32 %v1524, 1.442695
    %v1536 = vpow.pop %v1535
    %v1537 = vmul.f32 %v1525, 1.442695
    %v1538 = vpow.pop %v1537
    %v1539 = vmul.f32 %v1526, 1.442695
    %v1540 = vpow.pop %v1539
    %v1541 = vmul.f32 %v1527, 1.442695
    %v1542 = vpow.pop %v1541
    %v1543 = vmul.f32 %v1528, 1.442695
    %v1544 = vpow.pop %v1543
    %v1545 = vadd.f32 %v1530, 1.0
    %v1546 = vadd.f32 %v1532, 1.0
    %v1547 = vadd.f32 %v1534, 1.0
    %v1548 = vadd.f32 %v1536, 1.0
    %v1549 = vadd.f32 %v1538, 1.0
    %v1550 = vadd.f32 %v1540, 1.0
    %v1551 = vadd.f32 %v1542, 1.0
    %v1552 = vadd.f32 %v1544, 1.0
    %v1553 = vrcp.pop %v1545
    %v1554 = vmul.f32 %v1545, %v1553
    %v1555 = vsub.f32 1.0, %v1554
    %v1556 = vmul.f32 %v1553, %v1555
    %v1557 = vadd.f32 %v1553, %v1556
    %vm1558 = vweird.f32 %v1545
    %vm1559 = vweird.f32 %v1553
    %vm1560 = vmor %vm1558, %vm1559
    %v1561 = vsel %vm1560, %v1553, %v1557
    %v1562 = vand.u32 2147483647, %v1545
    %vm1563 = vcmp.eq.f32.partialorder %v1562, 8.507059e+37
    %v1564 = vand.u32 %v1545, 2147483648
    %v1565 = vor.u32 1.1754944e-38, %v1564
    %v1566 = vsel %vm1563, %v1565, %v1561
    %v1567 = vmul.f32 1.0, %v1566
    %v1568 = vrcp.pop %v1546
    %v1569 = vmul.f32 %v1546, %v1568
    %v1570 = vsub.f32 1.0, %v1569
    %v1571 = vmul.f32 %v1568, %v1570
    %v1572 = vadd.f32 %v1568, %v1571
    %vm1573 = vweird.f32 %v1546
    %vm1574 = vweird.f32 %v1568
    %vm1575 = vmor %vm1573, %vm1574
    %v1576 = vsel %vm1575, %v1568, %v1572
    %v1577 = vand.u32 2147483647, %v1546
    %vm1578 = vcmp.eq.f32.partialorder %v1577, 8.507059e+37
    %v1579 = vand.u32 %v1546, 2147483648
    %v1580 = vor.u32 1.1754944e-38, %v1579
    %v1581 = vsel %vm1578, %v1580, %v1576
    %v1582 = vmul.f32 1.0, %v1581
    %v1583 = vrcp.pop %v1547
    %v1584 = vmul.f32 %v1547, %v1583
    %v1585 = vsub.f32 1.0, %v1584
    %v1586 = vmul.f32 %v1583, %v1585
    %v1587 = vadd.f32 %v1583, %v1586
    %vm1588 = vweird.f32 %v1547
    %vm1589 = vweird.f32 %v1583
    %vm1590 = vmor %vm1588, %vm1589
    %v1591 = vsel %vm1590, %v1583, %v1587
    %v1592 = vand.u32 2147483647, %v1547
    %vm1593 = vcmp.eq.f32.partialorder %v1592, 8.507059e+37
    %v1594 = vand.u32 %v1547, 2147483648
    %v1595 = vor.u32 1.1754944e-38, %v1594
    %v1596 = vsel %vm1593, %v1595, %v1591
    %v1597 = vmul.f32 1.0, %v1596
    %v1598 = vrcp.pop %v1548
    %v1599 = vmul.f32 %v1548, %v1598
    %v1600 = vsub.f32 1.0, %v1599
    %v1601 = vmul.f32 %v1598, %v1600
    %v1602 = vadd.f32 %v1598, %v1601
    %vm1603 = vweird.f32 %v1548
    %vm1604 = vweird.f32 %v1598
    %vm1605 = vmor %vm1603, %vm1604
    %v1606 = vsel %vm1605, %v1598, %v1602
    %v1607 = vand.u32 2147483647, %v1548
    %vm1608 = vcmp.eq.f32.partialorder %v1607, 8.507059e+37
    %v1609 = vand.u32 %v1548, 2147483648
    %v1610 = vor.u32 1.1754944e-38, %v1609
    %v1611 = vsel %vm1608, %v1610, %v1606
    %v1612 = vmul.f32 1.0, %v1611
    %v1613 = vrcp.pop %v1549
    %v1614 = vmul.f32 %v1549, %v1613
    %v1615 = vsub.f32 1.0, %v1614
    %v1616 = vmul.f32 %v1613, %v1615
    %v1617 = vadd.f32 %v1613, %v1616
    %vm1618 = vweird.f32 %v1549
    %vm1619 = vweird.f32 %v1613
    %vm1620 = vmor %vm1618, %vm1619
    %v1621 = vsel %vm1620, %v1613, %v1617
    %v1622 = vand.u32 2147483647, %v1549
    %vm1623 = vcmp.eq.f32.partialorder %v1622, 8.507059e+37
    %v1624 = vand.u32 %v1549, 2147483648
    %v1625 = vor.u32 1.1754944e-38, %v1624
    %v1626 = vsel %vm1623, %v1625, %v1621
    %v1627 = vmul.f32 1.0, %v1626
    %v1628 = vrcp.pop %v1550
    %v1629 = vmul.f32 %v1550, %v1628
    %v1630 = vsub.f32 1.0, %v1629
    %v1631 = vmul.f32 %v1628, %v1630
    %v1632 = vadd.f32 %v1628, %v1631
    %vm1633 = vweird.f32 %v1550
    %vm1634 = vweird.f32 %v1628
    %vm1635 = vmor %vm1633, %vm1634
    %v1636 = vsel %vm1635, %v1628, %v1632
    %v1637 = vand.u32 2147483647, %v1550
    %vm1638 = vcmp.eq.f32.partialorder %v1637, 8.507059e+37
    %v1639 = vand.u32 %v1550, 2147483648
    %v1640 = vor.u32 1.1754944e-38, %v1639
    %v1641 = vsel %vm1638, %v1640, %v1636
    %v1642 = vmul.f32 1.0, %v1641
    %v1643 = vrcp.pop %v1551
    %v1644 = vmul.f32 %v1551, %v1643
    %v1645 = vsub.f32 1.0, %v1644
    %v1646 = vmul.f32 %v1643, %v1645
    %v1647 = vadd.f32 %v1643, %v1646
    %vm1648 = vweird.f32 %v1551
    %vm1649 = vweird.f32 %v1643
    %vm1650 = vmor %vm1648, %vm1649
    %v1651 = vsel %vm1650, %v1643, %v1647
    %v1652 = vand.u32 2147483647, %v1551
    %vm1653 = vcmp.eq.f32.partialorder %v1652, 8.507059e+37
    %v1654 = vand.u32 %v1551, 2147483648
    %v1655 = vor.u32 1.1754944e-38, %v1654
    %v1656 = vsel %vm1653, %v1655, %v1651
    %v1657 = vmul.f32 1.0, %v1656
    %v1658 = vrcp.pop %v1552
    %v1659 = vmul.f32 %v1552, %v1658
    %v1660 = vsub.f32 1.0, %v1659
    %v1661 = vmul.f32 %v1658, %v1660
    %v1662 = vadd.f32 %v1658, %v1661
    %vm1663 = vweird.f32 %v1552
    %vm1664 = vweird.f32 %v1658
    %vm1665 = vmor %vm1663, %vm1664
    %v1666 = vsel %vm1665, %v1658, %v1662
    %v1667 = vand.u32 2147483647, %v1552
    %vm1668 = vcmp.eq.f32.partialorder %v1667, 8.507059e+37
    %v1669 = vand.u32 %v1552, 2147483648
    %v1670 = vor.u32 1.1754944e-38, %v1669
    %v1671 = vsel %vm1668, %v1670, %v1666
    %v1672 = vmul.f32 1.0, %v1671
    %v1681 = vrot.slane %v1513, 4
    %v1682 = vrot.slane %v1514, 3
    %v1683 = vsel %vm394, %v1682, %v1681
    %v1684 = vrot.slane %v1515, 2
    %v1685 = vsel %vm397, %v1684, %v1683
    %v1686 = vrot.slane %v1516, 1
    %v1687 = vsel %vm400, %v1686, %v1685
    %v1688 = vsel %vm403, %v1517, %v1687
    %v1689 = vrot.slane %v1518, 7
    %v1690 = vsel %vm406, %v1689, %v1688
    %v1691 = vrot.slane %v1519, 6
    %v1692 = vsel %vm409, %v1691, %v1690
    %v1693 = vrot.slane %v1520, 5
    %v1694 = vsel %vm412, %v1693, %v1692
    %v1704 = vrot.slane %v1567, 4
    %v1705 = vrot.slane %v1582, 3
    %v1706 = vsel %vm394, %v1705, %v1704
    %v1707 = vrot.slane %v1597, 2
    %v1708 = vsel %vm397, %v1707, %v1706
    %v1709 = vrot.slane %v1612, 1
    %v1710 = vsel %vm400, %v1709, %v1708
    %v1711 = vsel %vm403, %v1627, %v1710
    %v1712 = vrot.slane %v1642, 7
    %v1713 = vsel %vm406, %v1712, %v1711
    %v1714 = vrot.slane %v1657, 6
    %v1715 = vsel %vm409, %v1714, %v1713
    %v1716 = vrot.slane %v1672, 5
    %v1717 = vsel %vm412, %v1716, %v1715
    %v1719 = vsel %vm177, %v1694, %v1717
    %v1720 = vmul.f32 %v1719, %v1410
    %1722 = vrot.lane.b32.xlu0 %v1719, 64
    %v1723 = vpop.permute.xlu0 %1722
    %v1725 = vmul.f32 %v1719, %v1723
    %1727 = vrot.lane.b32.xlu0 %v1725, 32
    %v1728 = vpop.permute.xlu0 %1727
    %v1730 = vadd.f32 %v1720, %v1728
    %v1731 = vtanh.pop %v1730
    %1733 = vrot.lane.b32.xlu0 %v1731, 64
    %v1734 = vpop.permute.xlu0 %1733
    %v1736 = vmul.f32 %v1719, %v1734
    %v1738 = vrot.slane %v1736, 1
    %v1739 = vrot.slane %v1736, 2
    %v1740 = vrot.slane %v1736, 3
    %v1741 = vrot.slane %v1736, 4
    %v1742 = vrot.slane %v1736, 5
    %v1743 = vrot.slane %v1736, 6
    %v1744 = vrot.slane %v1736, 7
    %v1745 = vperm.slane %v1736, 0
    %v1746 = vperm.slane %v1738, 0
    %v1747 = vperm.slane %v1739, 0
    %v1748 = vperm.slane %v1740, 0
    %v1749 = vperm.slane %v1741, 0
    %v1750 = vperm.slane %v1742, 0
    %v1751 = vperm.slane %v1743, 0
    %v1752 = vperm.slane %v1744, 0
    %1753 = vrot.lane.b32.xlu0 %v1745, 32
    %v1754 = vpop.permute.xlu0 %1753
    %1755 = vrot.lane.b32.xlu0 %v1746, 32
    %v1756 = vpop.permute.xlu0 %1755
    %1757 = vrot.lane.b32.xlu0 %v1747, 32
    %v1758 = vpop.permute.xlu0 %1757
    %1759 = vrot.lane.b32.xlu0 %v1748, 32
    %v1760 = vpop.permute.xlu0 %1759
    %1761 = vrot.lane.b32.xlu0 %v1749, 32
    %v1762 = vpop.permute.xlu0 %1761
    %1763 = vrot.lane.b32.xlu0 %v1750, 32
    %v1764 = vpop.permute.xlu0 %1763
    %1765 = vrot.lane.b32.xlu0 %v1751, 32
    %v1766 = vpop.permute.xlu0 %1765
    %1767 = vrot.lane.b32.xlu0 %v1752, 32
    %v1768 = vpop.permute.xlu0 %1767
    %1777 = vst.msk [vmem:[#allocation2 + $0x4] sm:$0x1] %vm496, %v1754
    %1778 = vst.msk [vmem:[#allocation2 + $0xc] sm:$0x1] %vm496, %v1756
    %1779 = vst.msk [vmem:[#allocation2 + $0x14] sm:$0x1] %vm496, %v1758
    %1780 = vst.msk [vmem:[#allocation2 + $0x1c] sm:$0x1] %vm496, %v1760
    %1781 = vst.msk [vmem:[#allocation2 + $0x24] sm:$0x1] %vm496, %v1762
    %1782 = vst.msk [vmem:[#allocation2 + $0x2c] sm:$0x1] %vm496, %v1764
    %1783 = vst.msk [vmem:[#allocation2 + $0x34] sm:$0x1] %vm496, %v1766
    %1784 = vst.msk [vmem:[#allocation2 + $0x3c] sm:$0x1] %vm496, %v1768
    %1785 = vrot.lane.b32.xlu0 %v1736, 32
    %v1786 = vpop.permute.xlu0 %1785
    %v1787 = vsel %vm103, %v1786, 0
    %1789 = vmatpush.msra.mxu0 0.0
    %1790 = vmatpush.msra.mxu0 0.0
    %1791 = vmatpush.msra.mxu0 0.0
    %1792 = vmatpush.msra.mxu0 0.0
    %1793 = vmatpush.msra.mxu0 0.0
    %1794 = vmatpush.msra.mxu0 0.0
    %1795 = vmatpush.msra.mxu0 0.0
    %1796 = vmatpush.msra.mxu0 0.0
    %1797 = vmatpush.msra.mxu0 0.0
    %1798 = vmatpush.msra.mxu0 0.0
    %1799 = vmatpush.msra.mxu0 0.0
    %1800 = vmatpush.msra.mxu0 0.0
    %1801 = vmatpush.msra.mxu0 %v172
    %1802 = vmatpush.msra.mxu0 %v171
    %1803 = vmatpush.msra.mxu0 %v170
    %1804 = vmatpush.msra.mxu0 %v169
    %1805 = vmatmul.f32.gmra.mxu0 %v1787
    %v1806 = vpop.f32.mrf.mxu0
    %v1807 = vadd.f32 0.0, %v1806
    %1808 = vdwg.mxu0
    %v1810 = vrot.slane %v1807, 3
    %v1811 = vrot.slane %v1807, 4
    %v1812 = vrot.slane %v1807, 5
    %v1813 = vrot.slane %v1807, 6
    %v1814 = vrot.slane %v1807, 7
    %v1815 = vrot.slane %v1807, 1
    %v1816 = vrot.slane %v1807, 2
    %v1825 = vadd.f32 %v146, %v1810
    %v1826 = vadd.f32 %v149, %v1811
    %v1827 = vadd.f32 %v152, %v1812
    %v1828 = vadd.f32 %v155, %v1813
    %v1829 = vadd.f32 %v158, %v1814
    %v1830 = vadd.f32 %v161, %v1807
    %v1831 = vadd.f32 %v164, %v1815
    %v1832 = vadd.f32 %v167, %v1816
    %v1833 = vtanh.pop %v1825
    %v1834 = vtanh.pop %v1826
    %v1835 = vtanh.pop %v1827
    %v1836 = vtanh.pop %v1828
    %v1837 = vtanh.pop %v1829
    %v1838 = vtanh.pop %v1830
    %v1839 = vtanh.pop %v1831
    %v1840 = vtanh.pop %v1832
    %v1841 = vxor.u32 %v1825, 2147483648
    %v1842 = vxor.u32 %v1826, 2147483648
    %v1843 = vxor.u32 %v1827, 2147483648
    %v1844 = vxor.u32 %v1828, 2147483648
    %v1845 = vxor.u32 %v1829, 2147483648
    %v1846 = vxor.u32 %v1830, 2147483648
    %v1847 = vxor.u32 %v1831, 2147483648
    %v1848 = vxor.u32 %v1832, 2147483648
    %v1849 = vmul.f32 %v1841, 1.442695
    %v1850 = vpow.pop %v1849
    %v1851 = vmul.f32 %v1842, 1.442695
    %v1852 = vpow.pop %v1851
    %v1853 = vmul.f32 %v1843, 1.442695
    %v1854 = vpow.pop %v1853
    %v1855 = vmul.f32 %v1844, 1.442695
    %v1856 = vpow.pop %v1855
    %v1857 = vmul.f32 %v1845, 1.442695
    %v1858 = vpow.pop %v1857
    %v1859 = vmul.f32 %v1846, 1.442695
    %v1860 = vpow.pop %v1859
    %v1861 = vmul.f32 %v1847, 1.442695
    %v1862 = vpow.pop %v1861
    %v1863 = vmul.f32 %v1848, 1.442695
    %v1864 = vpow.pop %v1863
    %v1865 = vadd.f32 %v1850, 1.0
    %v1866 = vadd.f32 %v1852, 1.0
    %v1867 = vadd.f32 %v1854, 1.0
    %v1868 = vadd.f32 %v1856, 1.0
    %v1869 = vadd.f32 %v1858, 1.0
    %v1870 = vadd.f32 %v1860, 1.0
    %v1871 = vadd.f32 %v1862, 1.0
    %v1872 = vadd.f32 %v1864, 1.0
    %v1873 = vrcp.pop %v1865
    %v1874 = vmul.f32 %v1865, %v1873
    %v1875 = vsub.f32 1.0, %v1874
    %v1876 = vmul.f32 %v1873, %v1875
    %v1877 = vadd.f32 %v1873, %v1876
    %vm1878 = vweird.f32 %v1865
    %vm1879 = vweird.f32 %v1873
    %vm1880 = vmor %vm1878, %vm1879
    %v1881 = vsel %vm1880, %v1873, %v1877
    %v1882 = vand.u32 2147483647, %v1865
    %vm1883 = vcmp.eq.f32.partialorder %v1882, 8.507059e+37
    %v1884 = vand.u32 %v1865, 2147483648
    %v1885 = vor.u32 1.1754944e-38, %v1884
    %v1886 = vsel %vm1883, %v1885, %v1881
    %v1887 = vmul.f32 1.0, %v1886
    %v1888 = vrcp.pop %v1866
    %v1889 = vmul.f32 %v1866, %v1888
    %v1890 = vsub.f32 1.0, %v1889
    %v1891 = vmul.f32 %v1888, %v1890
    %v1892 = vadd.f32 %v1888, %v1891
    %vm1893 = vweird.f32 %v1866
    %vm1894 = vweird.f32 %v1888
    %vm1895 = vmor %vm1893, %vm1894
    %v1896 = vsel %vm1895, %v1888, %v1892
    %v1897 = vand.u32 2147483647, %v1866
    %vm1898 = vcmp.eq.f32.partialorder %v1897, 8.507059e+37
    %v1899 = vand.u32 %v1866, 2147483648
    %v1900 = vor.u32 1.1754944e-38, %v1899
    %v1901 = vsel %vm1898, %v1900, %v1896
    %v1902 = vmul.f32 1.0, %v1901
    %v1903 = vrcp.pop %v1867
    %v1904 = vmul.f32 %v1867, %v1903
    %v1905 = vsub.f32 1.0, %v1904
    %v1906 = vmul.f32 %v1903, %v1905
    %v1907 = vadd.f32 %v1903, %v1906
    %vm1908 = vweird.f32 %v1867
    %vm1909 = vweird.f32 %v1903
    %vm1910 = vmor %vm1908, %vm1909
    %v1911 = vsel %vm1910, %v1903, %v1907
    %v1912 = vand.u32 2147483647, %v1867
    %vm1913 = vcmp.eq.f32.partialorder %v1912, 8.507059e+37
    %v1914 = vand.u32 %v1867, 2147483648
    %v1915 = vor.u32 1.1754944e-38, %v1914
    %v1916 = vsel %vm1913, %v1915, %v1911
    %v1917 = vmul.f32 1.0, %v1916
    %v1918 = vrcp.pop %v1868
    %v1919 = vmul.f32 %v1868, %v1918
    %v1920 = vsub.f32 1.0, %v1919
    %v1921 = vmul.f32 %v1918, %v1920
    %v1922 = vadd.f32 %v1918, %v1921
    %vm1923 = vweird.f32 %v1868
    %vm1924 = vweird.f32 %v1918
    %vm1925 = vmor %vm1923, %vm1924
    %v1926 = vsel %vm1925, %v1918, %v1922
    %v1927 = vand.u32 2147483647, %v1868
    %vm1928 = vcmp.eq.f32.partialorder %v1927, 8.507059e+37
    %v1929 = vand.u32 %v1868, 2147483648
    %v1930 = vor.u32 1.1754944e-38, %v1929
    %v1931 = vsel %vm1928, %v1930, %v1926
    %v1932 = vmul.f32 1.0, %v1931
    %v1933 = vrcp.pop %v1869
    %v1934 = vmul.f32 %v1869, %v1933
    %v1935 = vsub.f32 1.0, %v1934
    %v1936 = vmul.f32 %v1933, %v1935
    %v1937 = vadd.f32 %v1933, %v1936
    %vm1938 = vweird.f32 %v1869
    %vm1939 = vweird.f32 %v1933
    %vm1940 = vmor %vm1938, %vm1939
    %v1941 = vsel %vm1940, %v1933, %v1937
    %v1942 = vand.u32 2147483647, %v1869
    %vm1943 = vcmp.eq.f32.partialorder %v1942, 8.507059e+37
    %v1944 = vand.u32 %v1869, 2147483648
    %v1945 = vor.u32 1.1754944e-38, %v1944
    %v1946 = vsel %vm1943, %v1945, %v1941
    %v1947 = vmul.f32 1.0, %v1946
    %v1948 = vrcp.pop %v1870
    %v1949 = vmul.f32 %v1870, %v1948
    %v1950 = vsub.f32 1.0, %v1949
    %v1951 = vmul.f32 %v1948, %v1950
    %v1952 = vadd.f32 %v1948, %v1951
    %vm1953 = vweird.f32 %v1870
    %vm1954 = vweird.f32 %v1948
    %vm1955 = vmor %vm1953, %vm1954
    %v1956 = vsel %vm1955, %v1948, %v1952
    %v1957 = vand.u32 2147483647, %v1870
    %vm1958 = vcmp.eq.f32.partialorder %v1957, 8.507059e+37
    %v1959 = vand.u32 %v1870, 2147483648
    %v1960 = vor.u32 1.1754944e-38, %v1959
    %v1961 = vsel %vm1958, %v1960, %v1956
    %v1962 = vmul.f32 1.0, %v1961
    %v1963 = vrcp.pop %v1871
    %v1964 = vmul.f32 %v1871, %v1963
    %v1965 = vsub.f32 1.0, %v1964
    %v1966 = vmul.f32 %v1963, %v1965
    %v1967 = vadd.f32 %v1963, %v1966
    %vm1968 = vweird.f32 %v1871
    %vm1969 = vweird.f32 %v1963
    %vm1970 = vmor %vm1968, %vm1969
    %v1971 = vsel %vm1970, %v1963, %v1967
    %v1972 = vand.u32 2147483647, %v1871
    %vm1973 = vcmp.eq.f32.partialorder %v1972, 8.507059e+37
    %v1974 = vand.u32 %v1871, 2147483648
    %v1975 = vor.u32 1.1754944e-38, %v1974
    %v1976 = vsel %vm1973, %v1975, %v1971
    %v1977 = vmul.f32 1.0, %v1976
    %v1978 = vrcp.pop %v1872
    %v1979 = vmul.f32 %v1872, %v1978
    %v1980 = vsub.f32 1.0, %v1979
    %v1981 = vmul.f32 %v1978, %v1980
    %v1982 = vadd.f32 %v1978, %v1981
    %vm1983 = vweird.f32 %v1872
    %vm1984 = vweird.f32 %v1978
    %vm1985 = vmor %vm1983, %vm1984
    %v1986 = vsel %vm1985, %v1978, %v1982
    %v1987 = vand.u32 2147483647, %v1872
    %vm1988 = vcmp.eq.f32.partialorder %v1987, 8.507059e+37
    %v1989 = vand.u32 %v1872, 2147483648
    %v1990 = vor.u32 1.1754944e-38, %v1989
    %v1991 = vsel %vm1988, %v1990, %v1986
    %v1992 = vmul.f32 1.0, %v1991
    %v2001 = vrot.slane %v1833, 5
    %v2002 = vrot.slane %v1834, 4
    %v2003 = vsel %vm394, %v2002, %v2001
    %v2004 = vrot.slane %v1835, 3
    %v2005 = vsel %vm397, %v2004, %v2003
    %v2006 = vrot.slane %v1836, 2
    %v2007 = vsel %vm400, %v2006, %v2005
    %v2008 = vrot.slane %v1837, 1
    %v2009 = vsel %vm403, %v2008, %v2007
    %v2010 = vsel %vm406, %v1838, %v2009
    %v2011 = vrot.slane %v1839, 7
    %v2012 = vsel %vm409, %v2011, %v2010
    %v2013 = vrot.slane %v1840, 6
    %v2014 = vsel %vm412, %v2013, %v2012
    %v2024 = vrot.slane %v1887, 5
    %v2025 = vrot.slane %v1902, 4
    %v2026 = vsel %vm394, %v2025, %v2024
    %v2027 = vrot.slane %v1917, 3
    %v2028 = vsel %vm397, %v2027, %v2026
    %v2029 = vrot.slane %v1932, 2
    %v2030 = vsel %vm400, %v2029, %v2028
    %v2031 = vrot.slane %v1947, 1
    %v2032 = vsel %vm403, %v2031, %v2030
    %v2033 = vsel %vm406, %v1962, %v2032
    %v2034 = vrot.slane %v1977, 7
    %v2035 = vsel %vm409, %v2034, %v2033
    %v2036 = vrot.slane %v1992, 6
    %v2037 = vsel %vm412, %v2036, %v2035
    %v2039 = vsel %vm177, %v2014, %v2037
    %v2040 = vmul.f32 %v2039, %v1730
    %2042 = vrot.lane.b32.xlu0 %v2039, 64
    %v2043 = vpop.permute.xlu0 %2042
    %v2045 = vmul.f32 %v2039, %v2043
    %2047 = vrot.lane.b32.xlu0 %v2045, 32
    %v2048 = vpop.permute.xlu0 %2047
    %v2050 = vadd.f32 %v2040, %v2048
    %v2051 = vtanh.pop %v2050
    %2053 = vrot.lane.b32.xlu0 %v2051, 64
    %v2054 = vpop.permute.xlu0 %2053
    %v2056 = vmul.f32 %v2039, %v2054
    %v2058 = vrot.slane %v2056, 1
    %v2059 = vrot.slane %v2056, 2
    %v2060 = vrot.slane %v2056, 3
    %v2061 = vrot.slane %v2056, 4
    %v2062 = vrot.slane %v2056, 5
    %v2063 = vrot.slane %v2056, 6
    %v2064 = vrot.slane %v2056, 7
    %v2065 = vperm.slane %v2056, 0
    %v2066 = vperm.slane %v2058, 0
    %v2067 = vperm.slane %v2059, 0
    %v2068 = vperm.slane %v2060, 0
    %v2069 = vperm.slane %v2061, 0
    %v2070 = vperm.slane %v2062, 0
    %v2071 = vperm.slane %v2063, 0
    %v2072 = vperm.slane %v2064, 0
    %2073 = vrot.lane.b32.xlu0 %v2065, 32
    %v2074 = vpop.permute.xlu0 %2073
    %2075 = vrot.lane.b32.xlu0 %v2066, 32
    %v2076 = vpop.permute.xlu0 %2075
    %2077 = vrot.lane.b32.xlu0 %v2067, 32
    %v2078 = vpop.permute.xlu0 %2077
    %2079 = vrot.lane.b32.xlu0 %v2068, 32
    %v2080 = vpop.permute.xlu0 %2079
    %2081 = vrot.lane.b32.xlu0 %v2069, 32
    %v2082 = vpop.permute.xlu0 %2081
    %2083 = vrot.lane.b32.xlu0 %v2070, 32
    %v2084 = vpop.permute.xlu0 %2083
    %2085 = vrot.lane.b32.xlu0 %v2071, 32
    %v2086 = vpop.permute.xlu0 %2085
    %2087 = vrot.lane.b32.xlu0 %v2072, 32
    %v2088 = vpop.permute.xlu0 %2087
    %2097 = vst.msk [vmem:[#allocation2 + $0x5] sm:$0x1] %vm496, %v2074
    %2098 = vst.msk [vmem:[#allocation2 + $0xd] sm:$0x1] %vm496, %v2076
    %2099 = vst.msk [vmem:[#allocation2 + $0x15] sm:$0x1] %vm496, %v2078
    %2100 = vst.msk [vmem:[#allocation2 + $0x1d] sm:$0x1] %vm496, %v2080
    %2101 = vst.msk [vmem:[#allocation2 + $0x25] sm:$0x1] %vm496, %v2082
    %2102 = vst.msk [vmem:[#allocation2 + $0x2d] sm:$0x1] %vm496, %v2084
    %2103 = vst.msk [vmem:[#allocation2 + $0x35] sm:$0x1] %vm496, %v2086
    %2104 = vst.msk [vmem:[#allocation2 + $0x3d] sm:$0x1] %vm496, %v2088
    %2105 = vrot.lane.b32.xlu0 %v2056, 32
    %v2106 = vpop.permute.xlu0 %2105
    %v2107 = vsel %vm103, %v2106, 0
    %2109 = vmatpush.msra.mxu0 0.0
    %2110 = vmatpush.msra.mxu0 0.0
    %2111 = vmatpush.msra.mxu0 0.0
    %2112 = vmatpush.msra.mxu0 0.0
    %2113 = vmatpush.msra.mxu0 0.0
    %2114 = vmatpush.msra.mxu0 0.0
    %2115 = vmatpush.msra.mxu0 0.0
    %2116 = vmatpush.msra.mxu0 0.0
    %2117 = vmatpush.msra.mxu0 0.0
    %2118 = vmatpush.msra.mxu0 0.0
    %2119 = vmatpush.msra.mxu0 0.0
    %2120 = vmatpush.msra.mxu0 0.0
    %2121 = vmatpush.msra.mxu0 %v172
    %2122 = vmatpush.msra.mxu0 %v171
    %2123 = vmatpush.msra.mxu0 %v170
    %2124 = vmatpush.msra.mxu0 %v169
    %2125 = vmatmul.f32.gmra.mxu0 %v2107
    %v2126 = vpop.f32.mrf.mxu0
    %v2127 = vadd.f32 0.0, %v2126
    %2128 = vdwg.mxu0
    %v2130 = vrot.slane %v2127, 2
    %v2131 = vrot.slane %v2127, 3
    %v2132 = vrot.slane %v2127, 4
    %v2133 = vrot.slane %v2127, 5
    %v2134 = vrot.slane %v2127, 6
    %v2135 = vrot.slane %v2127, 7
    %v2136 = vrot.slane %v2127, 1
    %v2145 = vadd.f32 %v146, %v2130
    %v2146 = vadd.f32 %v149, %v2131
    %v2147 = vadd.f32 %v152, %v2132
    %v2148 = vadd.f32 %v155, %v2133
    %v2149 = vadd.f32 %v158, %v2134
    %v2150 = vadd.f32 %v161, %v2135
    %v2151 = vadd.f32 %v164, %v2127
    %v2152 = vadd.f32 %v167, %v2136
    %v2153 = vtanh.pop %v2145
    %v2154 = vtanh.pop %v2146
    %v2155 = vtanh.pop %v2147
    %v2156 = vtanh.pop %v2148
    %v2157 = vtanh.pop %v2149
    %v2158 = vtanh.pop %v2150
    %v2159 = vtanh.pop %v2151
    %v2160 = vtanh.pop %v2152
    %v2161 = vxor.u32 %v2145, 2147483648
    %v2162 = vxor.u32 %v2146, 2147483648
    %v2163 = vxor.u32 %v2147, 2147483648
    %v2164 = vxor.u32 %v2148, 2147483648
    %v2165 = vxor.u32 %v2149, 2147483648
    %v2166 = vxor.u32 %v2150, 2147483648
    %v2167 = vxor.u32 %v2151, 2147483648
    %v2168 = vxor.u32 %v2152, 2147483648
    %v2169 = vmul.f32 %v2161, 1.442695
    %v2170 = vpow.pop %v2169
    %v2171 = vmul.f32 %v2162, 1.442695
    %v2172 = vpow.pop %v2171
    %v2173 = vmul.f32 %v2163, 1.442695
    %v2174 = vpow.pop %v2173
    %v2175 = vmul.f32 %v2164, 1.442695
    %v2176 = vpow.pop %v2175
    %v2177 = vmul.f32 %v2165, 1.442695
    %v2178 = vpow.pop %v2177
    %v2179 = vmul.f32 %v2166, 1.442695
    %v2180 = vpow.pop %v2179
    %v2181 = vmul.f32 %v2167, 1.442695
    %v2182 = vpow.pop %v2181
    %v2183 = vmul.f32 %v2168, 1.442695
    %v2184 = vpow.pop %v2183
    %v2185 = vadd.f32 %v2170, 1.0
    %v2186 = vadd.f32 %v2172, 1.0
    %v2187 = vadd.f32 %v2174, 1.0
    %v2188 = vadd.f32 %v2176, 1.0
    %v2189 = vadd.f32 %v2178, 1.0
    %v2190 = vadd.f32 %v2180, 1.0
    %v2191 = vadd.f32 %v2182, 1.0
    %v2192 = vadd.f32 %v2184, 1.0
    %v2193 = vrcp.pop %v2185
    %v2194 = vmul.f32 %v2185, %v2193
    %v2195 = vsub.f32 1.0, %v2194
    %v2196 = vmul.f32 %v2193, %v2195
    %v2197 = vadd.f32 %v2193, %v2196
    %vm2198 = vweird.f32 %v2185
    %vm2199 = vweird.f32 %v2193
    %vm2200 = vmor %vm2198, %vm2199
    %v2201 = vsel %vm2200, %v2193, %v2197
    %v2202 = vand.u32 2147483647, %v2185
    %vm2203 = vcmp.eq.f32.partialorder %v2202, 8.507059e+37
    %v2204 = vand.u32 %v2185, 2147483648
    %v2205 = vor.u32 1.1754944e-38, %v2204
    %v2206 = vsel %vm2203, %v2205, %v2201
    %v2207 = vmul.f32 1.0, %v2206
    %v2208 = vrcp.pop %v2186
    %v2209 = vmul.f32 %v2186, %v2208
    %v2210 = vsub.f32 1.0, %v2209
    %v2211 = vmul.f32 %v2208, %v2210
    %v2212 = vadd.f32 %v2208, %v2211
    %vm2213 = vweird.f32 %v2186
    %vm2214 = vweird.f32 %v2208
    %vm2215 = vmor %vm2213, %vm2214
    %v2216 = vsel %vm2215, %v2208, %v2212
    %v2217 = vand.u32 2147483647, %v2186
    %vm2218 = vcmp.eq.f32.partialorder %v2217, 8.507059e+37
    %v2219 = vand.u32 %v2186, 2147483648
    %v2220 = vor.u32 1.1754944e-38, %v2219
    %v2221 = vsel %vm2218, %v2220, %v2216
    %v2222 = vmul.f32 1.0, %v2221
    %v2223 = vrcp.pop %v2187
    %v2224 = vmul.f32 %v2187, %v2223
    %v2225 = vsub.f32 1.0, %v2224
    %v2226 = vmul.f32 %v2223, %v2225
    %v2227 = vadd.f32 %v2223, %v2226
    %vm2228 = vweird.f32 %v2187
    %vm2229 = vweird.f32 %v2223
    %vm2230 = vmor %vm2228, %vm2229
    %v2231 = vsel %vm2230, %v2223, %v2227
    %v2232 = vand.u32 2147483647, %v2187
    %vm2233 = vcmp.eq.f32.partialorder %v2232, 8.507059e+37
    %v2234 = vand.u32 %v2187, 2147483648
    %v2235 = vor.u32 1.1754944e-38, %v2234
    %v2236 = vsel %vm2233, %v2235, %v2231
    %v2237 = vmul.f32 1.0, %v2236
    %v2238 = vrcp.pop %v2188
    %v2239 = vmul.f32 %v2188, %v2238
    %v2240 = vsub.f32 1.0, %v2239
    %v2241 = vmul.f32 %v2238, %v2240
    %v2242 = vadd.f32 %v2238, %v2241
    %vm2243 = vweird.f32 %v2188
    %vm2244 = vweird.f32 %v2238
    %vm2245 = vmor %vm2243, %vm2244
    %v2246 = vsel %vm2245, %v2238, %v2242
    %v2247 = vand.u32 2147483647, %v2188
    %vm2248 = vcmp.eq.f32.partialorder %v2247, 8.507059e+37
    %v2249 = vand.u32 %v2188, 2147483648
    %v2250 = vor.u32 1.1754944e-38, %v2249
    %v2251 = vsel %vm2248, %v2250, %v2246
    %v2252 = vmul.f32 1.0, %v2251
    %v2253 = vrcp.pop %v2189
    %v2254 = vmul.f32 %v2189, %v2253
    %v2255 = vsub.f32 1.0, %v2254
    %v2256 = vmul.f32 %v2253, %v2255
    %v2257 = vadd.f32 %v2253, %v2256
    %vm2258 = vweird.f32 %v2189
    %vm2259 = vweird.f32 %v2253
    %vm2260 = vmor %vm2258, %vm2259
    %v2261 = vsel %vm2260, %v2253, %v2257
    %v2262 = vand.u32 2147483647, %v2189
    %vm2263 = vcmp.eq.f32.partialorder %v2262, 8.507059e+37
    %v2264 = vand.u32 %v2189, 2147483648
    %v2265 = vor.u32 1.1754944e-38, %v2264
    %v2266 = vsel %vm2263, %v2265, %v2261
    %v2267 = vmul.f32 1.0, %v2266
    %v2268 = vrcp.pop %v2190
    %v2269 = vmul.f32 %v2190, %v2268
    %v2270 = vsub.f32 1.0, %v2269
    %v2271 = vmul.f32 %v2268, %v2270
    %v2272 = vadd.f32 %v2268, %v2271
    %vm2273 = vweird.f32 %v2190
    %vm2274 = vweird.f32 %v2268
    %vm2275 = vmor %vm2273, %vm2274
    %v2276 = vsel %vm2275, %v2268, %v2272
    %v2277 = vand.u32 2147483647, %v2190
    %vm2278 = vcmp.eq.f32.partialorder %v2277, 8.507059e+37
    %v2279 = vand.u32 %v2190, 2147483648
    %v2280 = vor.u32 1.1754944e-38, %v2279
    %v2281 = vsel %vm2278, %v2280, %v2276
    %v2282 = vmul.f32 1.0, %v2281
    %v2283 = vrcp.pop %v2191
    %v2284 = vmul.f32 %v2191, %v2283
    %v2285 = vsub.f32 1.0, %v2284
    %v2286 = vmul.f32 %v2283, %v2285
    %v2287 = vadd.f32 %v2283, %v2286
    %vm2288 = vweird.f32 %v2191
    %vm2289 = vweird.f32 %v2283
    %vm2290 = vmor %vm2288, %vm2289
    %v2291 = vsel %vm2290, %v2283, %v2287
    %v2292 = vand.u32 2147483647, %v2191
    %vm2293 = vcmp.eq.f32.partialorder %v2292, 8.507059e+37
    %v2294 = vand.u32 %v2191, 2147483648
    %v2295 = vor.u32 1.1754944e-38, %v2294
    %v2296 = vsel %vm2293, %v2295, %v2291
    %v2297 = vmul.f32 1.0, %v2296
    %v2298 = vrcp.pop %v2192
    %v2299 = vmul.f32 %v2192, %v2298
    %v2300 = vsub.f32 1.0, %v2299
    %v2301 = vmul.f32 %v2298, %v2300
    %v2302 = vadd.f32 %v2298, %v2301
    %vm2303 = vweird.f32 %v2192
    %vm2304 = vweird.f32 %v2298
    %vm2305 = vmor %vm2303, %vm2304
    %v2306 = vsel %vm2305, %v2298, %v2302
    %v2307 = vand.u32 2147483647, %v2192
    %vm2308 = vcmp.eq.f32.partialorder %v2307, 8.507059e+37
    %v2309 = vand.u32 %v2192, 2147483648
    %v2310 = vor.u32 1.1754944e-38, %v2309
    %v2311 = vsel %vm2308, %v2310, %v2306
    %v2312 = vmul.f32 1.0, %v2311
    %v2321 = vrot.slane %v2153, 6
    %v2322 = vrot.slane %v2154, 5
    %v2323 = vsel %vm394, %v2322, %v2321
    %v2324 = vrot.slane %v2155, 4
    %v2325 = vsel %vm397, %v2324, %v2323
    %v2326 = vrot.slane %v2156, 3
    %v2327 = vsel %vm400, %v2326, %v2325
    %v2328 = vrot.slane %v2157, 2
    %v2329 = vsel %vm403, %v2328, %v2327
    %v2330 = vrot.slane %v2158, 1
    %v2331 = vsel %vm406, %v2330, %v2329
    %v2332 = vsel %vm409, %v2159, %v2331
    %v2333 = vrot.slane %v2160, 7
    %v2334 = vsel %vm412, %v2333, %v2332
    %v2344 = vrot.slane %v2207, 6
    %v2345 = vrot.slane %v2222, 5
    %v2346 = vsel %vm394, %v2345, %v2344
    %v2347 = vrot.slane %v2237, 4
    %v2348 = vsel %vm397, %v2347, %v2346
    %v2349 = vrot.slane %v2252, 3
    %v2350 = vsel %vm400, %v2349, %v2348
    %v2351 = vrot.slane %v2267, 2
    %v2352 = vsel %vm403, %v2351, %v2350
    %v2353 = vrot.slane %v2282, 1
    %v2354 = vsel %vm406, %v2353, %v2352
    %v2355 = vsel %vm409, %v2297, %v2354
    %v2356 = vrot.slane %v2312, 7
    %v2357 = vsel %vm412, %v2356, %v2355
    %v2359 = vsel %vm177, %v2334, %v2357
    %v2360 = vmul.f32 %v2359, %v2050
    %2362 = vrot.lane.b32.xlu0 %v2359, 64
    %v2363 = vpop.permute.xlu0 %2362
    %v2365 = vmul.f32 %v2359, %v2363
    %2367 = vrot.lane.b32.xlu0 %v2365, 32
    %v2368 = vpop.permute.xlu0 %2367
    %v2370 = vadd.f32 %v2360, %v2368
    %v2371 = vtanh.pop %v2370
    %2373 = vrot.lane.b32.xlu0 %v2371, 64
    %v2374 = vpop.permute.xlu0 %2373
    %v2376 = vmul.f32 %v2359, %v2374
    %v2378 = vrot.slane %v2376, 1
    %v2379 = vrot.slane %v2376, 2
    %v2380 = vrot.slane %v2376, 3
    %v2381 = vrot.slane %v2376, 4
    %v2382 = vrot.slane %v2376, 5
    %v2383 = vrot.slane %v2376, 6
    %v2384 = vrot.slane %v2376, 7
    %v2385 = vperm.slane %v2376, 0
    %v2386 = vperm.slane %v2378, 0
    %v2387 = vperm.slane %v2379, 0
    %v2388 = vperm.slane %v2380, 0
    %v2389 = vperm.slane %v2381, 0
    %v2390 = vperm.slane %v2382, 0
    %v2391 = vperm.slane %v2383, 0
    %v2392 = vperm.slane %v2384, 0
    %2393 = vrot.lane.b32.xlu0 %v2385, 32
    %v2394 = vpop.permute.xlu0 %2393
    %2395 = vrot.lane.b32.xlu0 %v2386, 32
    %v2396 = vpop.permute.xlu0 %2395
    %2397 = vrot.lane.b32.xlu0 %v2387, 32
    %v2398 = vpop.permute.xlu0 %2397
    %2399 = vrot.lane.b32.xlu0 %v2388, 32
    %v2400 = vpop.permute.xlu0 %2399
    %2401 = vrot.lane.b32.xlu0 %v2389, 32
    %v2402 = vpop.permute.xlu0 %2401
    %2403 = vrot.lane.b32.xlu0 %v2390, 32
    %v2404 = vpop.permute.xlu0 %2403
    %2405 = vrot.lane.b32.xlu0 %v2391, 32
    %v2406 = vpop.permute.xlu0 %2405
    %2407 = vrot.lane.b32.xlu0 %v2392, 32
    %v2408 = vpop.permute.xlu0 %2407
    %2417 = vst.msk [vmem:[#allocation2 + $0x6] sm:$0x1] %vm496, %v2394
    %2418 = vst.msk [vmem:[#allocation2 + $0xe] sm:$0x1] %vm496, %v2396
    %2419 = vst.msk [vmem:[#allocation2 + $0x16] sm:$0x1] %vm496, %v2398
    %2420 = vst.msk [vmem:[#allocation2 + $0x1e] sm:$0x1] %vm496, %v2400
    %2421 = vst.msk [vmem:[#allocation2 + $0x26] sm:$0x1] %vm496, %v2402
    %2422 = vst.msk [vmem:[#allocation2 + $0x2e] sm:$0x1] %vm496, %v2404
    %2423 = vst.msk [vmem:[#allocation2 + $0x36] sm:$0x1] %vm496, %v2406
    %2424 = vst.msk [vmem:[#allocation2 + $0x3e] sm:$0x1] %vm496, %v2408
    %2425 = vrot.lane.b32.xlu0 %v2376, 32
    %v2426 = vpop.permute.xlu0 %2425
    %v2427 = vsel %vm103, %v2426, 0
    %2429 = vmatpush.msra.mxu0 0.0
    %2430 = vmatpush.msra.mxu0 0.0
    %2431 = vmatpush.msra.mxu0 0.0
    %2432 = vmatpush.msra.mxu0 0.0
    %2433 = vmatpush.msra.mxu0 0.0
    %2434 = vmatpush.msra.mxu0 0.0
    %2435 = vmatpush.msra.mxu0 0.0
    %2436 = vmatpush.msra.mxu0 0.0
    %2437 = vmatpush.msra.mxu0 0.0
    %2438 = vmatpush.msra.mxu0 0.0
    %2439 = vmatpush.msra.mxu0 0.0
    %2440 = vmatpush.msra.mxu0 0.0
    %2441 = vmatpush.msra.mxu0 %v172
    %2442 = vmatpush.msra.mxu0 %v171
    %2443 = vmatpush.msra.mxu0 %v170
    %2444 = vmatpush.msra.mxu0 %v169
    %2445 = vmatmul.f32.gmra.mxu0 %v2427
    %v2446 = vpop.f32.mrf.mxu0
    %v2447 = vadd.f32 0.0, %v2446
    %2448 = vdwg.mxu0
    %v2450 = vrot.slane %v2447, 1
    %v2451 = vrot.slane %v2447, 2
    %v2452 = vrot.slane %v2447, 3
    %v2453 = vrot.slane %v2447, 4
    %v2454 = vrot.slane %v2447, 5
    %v2455 = vrot.slane %v2447, 6
    %v2456 = vrot.slane %v2447, 7
    %v2465 = vadd.f32 %v146, %v2450
    %v2466 = vadd.f32 %v149, %v2451
    %v2467 = vadd.f32 %v152, %v2452
    %v2468 = vadd.f32 %v155, %v2453
    %v2469 = vadd.f32 %v158, %v2454
    %v2470 = vadd.f32 %v161, %v2455
    %v2471 = vadd.f32 %v164, %v2456
    %v2472 = vadd.f32 %v167, %v2447
    %v2473 = vtanh.pop %v2465
    %v2474 = vtanh.pop %v2466
    %v2475 = vtanh.pop %v2467
    %v2476 = vtanh.pop %v2468
    %v2477 = vtanh.pop %v2469
    %v2478 = vtanh.pop %v2470
    %v2479 = vtanh.pop %v2471
    %v2480 = vtanh.pop %v2472
    %v2481 = vxor.u32 %v2465, 2147483648
    %v2482 = vxor.u32 %v2466, 2147483648
    %v2483 = vxor.u32 %v2467, 2147483648
    %v2484 = vxor.u32 %v2468, 2147483648
    %v2485 = vxor.u32 %v2469, 2147483648
    %v2486 = vxor.u32 %v2470, 2147483648
    %v2487 = vxor.u32 %v2471, 2147483648
    %v2488 = vxor.u32 %v2472, 2147483648
    %v2489 = vmul.f32 %v2481, 1.442695
    %v2490 = vpow.pop %v2489
    %v2491 = vmul.f32 %v2482, 1.442695
    %v2492 = vpow.pop %v2491
    %v2493 = vmul.f32 %v2483, 1.442695
    %v2494 = vpow.pop %v2493
    %v2495 = vmul.f32 %v2484, 1.442695
    %v2496 = vpow.pop %v2495
    %v2497 = vmul.f32 %v2485, 1.442695
    %v2498 = vpow.pop %v2497
    %v2499 = vmul.f32 %v2486, 1.442695
    %v2500 = vpow.pop %v2499
    %v2501 = vmul.f32 %v2487, 1.442695
    %v2502 = vpow.pop %v2501
    %v2503 = vmul.f32 %v2488, 1.442695
    %v2504 = vpow.pop %v2503
    %v2505 = vadd.f32 %v2490, 1.0
    %v2506 = vadd.f32 %v2492, 1.0
    %v2507 = vadd.f32 %v2494, 1.0
    %v2508 = vadd.f32 %v2496, 1.0
    %v2509 = vadd.f32 %v2498, 1.0
    %v2510 = vadd.f32 %v2500, 1.0
    %v2511 = vadd.f32 %v2502, 1.0
    %v2512 = vadd.f32 %v2504, 1.0
    %v2513 = vrcp.pop %v2505
    %v2514 = vmul.f32 %v2505, %v2513
    %v2515 = vsub.f32 1.0, %v2514
    %v2516 = vmul.f32 %v2513, %v2515
    %v2517 = vadd.f32 %v2513, %v2516
    %vm2518 = vweird.f32 %v2505
    %vm2519 = vweird.f32 %v2513
    %vm2520 = vmor %vm2518, %vm2519
    %v2521 = vsel %vm2520, %v2513, %v2517
    %v2522 = vand.u32 2147483647, %v2505
    %vm2523 = vcmp.eq.f32.partialorder %v2522, 8.507059e+37
    %v2524 = vand.u32 %v2505, 2147483648
    %v2525 = vor.u32 1.1754944e-38, %v2524
    %v2526 = vsel %vm2523, %v2525, %v2521
    %v2527 = vmul.f32 1.0, %v2526
    %v2528 = vrcp.pop %v2506
    %v2529 = vmul.f32 %v2506, %v2528
    %v2530 = vsub.f32 1.0, %v2529
    %v2531 = vmul.f32 %v2528, %v2530
    %v2532 = vadd.f32 %v2528, %v2531
    %vm2533 = vweird.f32 %v2506
    %vm2534 = vweird.f32 %v2528
    %vm2535 = vmor %vm2533, %vm2534
    %v2536 = vsel %vm2535, %v2528, %v2532
    %v2537 = vand.u32 2147483647, %v2506
    %vm2538 = vcmp.eq.f32.partialorder %v2537, 8.507059e+37
    %v2539 = vand.u32 %v2506, 2147483648
    %v2540 = vor.u32 1.1754944e-38, %v2539
    %v2541 = vsel %vm2538, %v2540, %v2536
    %v2542 = vmul.f32 1.0, %v2541
    %v2543 = vrcp.pop %v2507
    %v2544 = vmul.f32 %v2507, %v2543
    %v2545 = vsub.f32 1.0, %v2544
    %v2546 = vmul.f32 %v2543, %v2545
    %v2547 = vadd.f32 %v2543, %v2546
    %vm2548 = vweird.f32 %v2507
    %vm2549 = vweird.f32 %v2543
    %vm2550 = vmor %vm2548, %vm2549
    %v2551 = vsel %vm2550, %v2543, %v2547
    %v2552 = vand.u32 2147483647, %v2507
    %vm2553 = vcmp.eq.f32.partialorder %v2552, 8.507059e+37
    %v2554 = vand.u32 %v2507, 2147483648
    %v2555 = vor.u32 1.1754944e-38, %v2554
    %v2556 = vsel %vm2553, %v2555, %v2551
    %v2557 = vmul.f32 1.0, %v2556
    %v2558 = vrcp.pop %v2508
    %v2559 = vmul.f32 %v2508, %v2558
    %v2560 = vsub.f32 1.0, %v2559
    %v2561 = vmul.f32 %v2558, %v2560
    %v2562 = vadd.f32 %v2558, %v2561
    %vm2563 = vweird.f32 %v2508
    %vm2564 = vweird.f32 %v2558
    %vm2565 = vmor %vm2563, %vm2564
    %v2566 = vsel %vm2565, %v2558, %v2562
    %v2567 = vand.u32 2147483647, %v2508
    %vm2568 = vcmp.eq.f32.partialorder %v2567, 8.507059e+37
    %v2569 = vand.u32 %v2508, 2147483648
    %v2570 = vor.u32 1.1754944e-38, %v2569
    %v2571 = vsel %vm2568, %v2570, %v2566
    %v2572 = vmul.f32 1.0, %v2571
    %v2573 = vrcp.pop %v2509
    %v2574 = vmul.f32 %v2509, %v2573
    %v2575 = vsub.f32 1.0, %v2574
    %v2576 = vmul.f32 %v2573, %v2575
    %v2577 = vadd.f32 %v2573, %v2576
    %vm2578 = vweird.f32 %v2509
    %vm2579 = vweird.f32 %v2573
    %vm2580 = vmor %vm2578, %vm2579
    %v2581 = vsel %vm2580, %v2573, %v2577
    %v2582 = vand.u32 2147483647, %v2509
    %vm2583 = vcmp.eq.f32.partialorder %v2582, 8.507059e+37
    %v2584 = vand.u32 %v2509, 2147483648
    %v2585 = vor.u32 1.1754944e-38, %v2584
    %v2586 = vsel %vm2583, %v2585, %v2581
    %v2587 = vmul.f32 1.0, %v2586
    %v2588 = vrcp.pop %v2510
    %v2589 = vmul.f32 %v2510, %v2588
    %v2590 = vsub.f32 1.0, %v2589
    %v2591 = vmul.f32 %v2588, %v2590
    %v2592 = vadd.f32 %v2588, %v2591
    %vm2593 = vweird.f32 %v2510
    %vm2594 = vweird.f32 %v2588
    %vm2595 = vmor %vm2593, %vm2594
    %v2596 = vsel %vm2595, %v2588, %v2592
    %v2597 = vand.u32 2147483647, %v2510
    %vm2598 = vcmp.eq.f32.partialorder %v2597, 8.507059e+37
    %v2599 = vand.u32 %v2510, 2147483648
    %v2600 = vor.u32 1.1754944e-38, %v2599
    %v2601 = vsel %vm2598, %v2600, %v2596
    %v2602 = vmul.f32 1.0, %v2601
    %v2603 = vrcp.pop %v2511
    %v2604 = vmul.f32 %v2511, %v2603
    %v2605 = vsub.f32 1.0, %v2604
    %v2606 = vmul.f32 %v2603, %v2605
    %v2607 = vadd.f32 %v2603, %v2606
    %vm2608 = vweird.f32 %v2511
    %vm2609 = vweird.f32 %v2603
    %vm2610 = vmor %vm2608, %vm2609
    %v2611 = vsel %vm2610, %v2603, %v2607
    %v2612 = vand.u32 2147483647, %v2511
    %vm2613 = vcmp.eq.f32.partialorder %v2612, 8.507059e+37
    %v2614 = vand.u32 %v2511, 2147483648
    %v2615 = vor.u32 1.1754944e-38, %v2614
    %v2616 = vsel %vm2613, %v2615, %v2611
    %v2617 = vmul.f32 1.0, %v2616
    %v2618 = vrcp.pop %v2512
    %v2619 = vmul.f32 %v2512, %v2618
    %v2620 = vsub.f32 1.0, %v2619
    %v2621 = vmul.f32 %v2618, %v2620
    %v2622 = vadd.f32 %v2618, %v2621
    %vm2623 = vweird.f32 %v2512
    %vm2624 = vweird.f32 %v2618
    %vm2625 = vmor %vm2623, %vm2624
    %v2626 = vsel %vm2625, %v2618, %v2622
    %v2627 = vand.u32 2147483647, %v2512
    %vm2628 = vcmp.eq.f32.partialorder %v2627, 8.507059e+37
    %v2629 = vand.u32 %v2512, 2147483648
    %v2630 = vor.u32 1.1754944e-38, %v2629
    %v2631 = vsel %vm2628, %v2630, %v2626
    %v2632 = vmul.f32 1.0, %v2631
    %v2641 = vrot.slane %v2473, 7
    %v2642 = vrot.slane %v2474, 6
    %v2643 = vsel %vm394, %v2642, %v2641
    %v2644 = vrot.slane %v2475, 5
    %v2645 = vsel %vm397, %v2644, %v2643
    %v2646 = vrot.slane %v2476, 4
    %v2647 = vsel %vm400, %v2646, %v2645
    %v2648 = vrot.slane %v2477, 3
    %v2649 = vsel %vm403, %v2648, %v2647
    %v2650 = vrot.slane %v2478, 2
    %v2651 = vsel %vm406, %v2650, %v2649
    %v2652 = vrot.slane %v2479, 1
    %v2653 = vsel %vm409, %v2652, %v2651
    %v2654 = vsel %vm412, %v2480, %v2653
    %v2664 = vrot.slane %v2527, 7
    %v2665 = vrot.slane %v2542, 6
    %v2666 = vsel %vm394, %v2665, %v2664
    %v2667 = vrot.slane %v2557, 5
    %v2668 = vsel %vm397, %v2667, %v2666
    %v2669 = vrot.slane %v2572, 4
    %v2670 = vsel %vm400, %v2669, %v2668
    %v2671 = vrot.slane %v2587, 3
    %v2672 = vsel %vm403, %v2671, %v2670
    %v2673 = vrot.slane %v2602, 2
    %v2674 = vsel %vm406, %v2673, %v2672
    %v2675 = vrot.slane %v2617, 1
    %v2676 = vsel %vm409, %v2675, %v2674
    %v2677 = vsel %vm412, %v2632, %v2676
    %v2679 = vsel %vm177, %v2654, %v2677
    %v2680 = vmul.f32 %v2679, %v2370
    %2682 = vrot.lane.b32.xlu0 %v2679, 64
    %v2683 = vpop.permute.xlu0 %2682
    %v2685 = vmul.f32 %v2679, %v2683
    %2687 = vrot.lane.b32.xlu0 %v2685, 32
    %v2688 = vpop.permute.xlu0 %2687
    %v2690 = vadd.f32 %v2680, %v2688
    %v2691 = vtanh.pop %v2690
    %2693 = vrot.lane.b32.xlu0 %v2691, 64
    %v2694 = vpop.permute.xlu0 %2693
    %v2696 = vmul.f32 %v2679, %v2694
    %v2698 = vrot.slane %v2696, 1
    %v2699 = vrot.slane %v2696, 2
    %v2700 = vrot.slane %v2696, 3
    %v2701 = vrot.slane %v2696, 4
    %v2702 = vrot.slane %v2696, 5
    %v2703 = vrot.slane %v2696, 6
    %v2704 = vrot.slane %v2696, 7
    %v2705 = vperm.slane %v2696, 0
    %v2706 = vperm.slane %v2698, 0
    %v2707 = vperm.slane %v2699, 0
    %v2708 = vperm.slane %v2700, 0
    %v2709 = vperm.slane %v2701, 0
    %v2710 = vperm.slane %v2702, 0
    %v2711 = vperm.slane %v2703, 0
    %v2712 = vperm.slane %v2704, 0
    %2713 = vrot.lane.b32.xlu0 %v2705, 32
    %v2714 = vpop.permute.xlu0 %2713
    %2715 = vrot.lane.b32.xlu0 %v2706, 32
    %v2716 = vpop.permute.xlu0 %2715
    %2717 = vrot.lane.b32.xlu0 %v2707, 32
    %v2718 = vpop.permute.xlu0 %2717
    %2719 = vrot.lane.b32.xlu0 %v2708, 32
    %v2720 = vpop.permute.xlu0 %2719
    %2721 = vrot.lane.b32.xlu0 %v2709, 32
    %v2722 = vpop.permute.xlu0 %2721
    %2723 = vrot.lane.b32.xlu0 %v2710, 32
    %v2724 = vpop.permute.xlu0 %2723
    %2725 = vrot.lane.b32.xlu0 %v2711, 32
    %v2726 = vpop.permute.xlu0 %2725
    %2727 = vrot.lane.b32.xlu0 %v2712, 32
    %v2728 = vpop.permute.xlu0 %2727
    %2737 = vst.msk [vmem:[#allocation2 + $0x7] sm:$0x1] %vm496, %v2714
    %2738 = vst.msk [vmem:[#allocation2 + $0xf] sm:$0x1] %vm496, %v2716
    %2739 = vst.msk [vmem:[#allocation2 + $0x17] sm:$0x1] %vm496, %v2718
    %2740 = vst.msk [vmem:[#allocation2 + $0x1f] sm:$0x1] %vm496, %v2720
    %2741 = vst.msk [vmem:[#allocation2 + $0x27] sm:$0x1] %vm496, %v2722
    %2742 = vst.msk [vmem:[#allocation2 + $0x2f] sm:$0x1] %vm496, %v2724
    %2743 = vst.msk [vmem:[#allocation2 + $0x37] sm:$0x1] %vm496, %v2726
    %2744 = vst.msk [vmem:[#allocation2 + $0x3f] sm:$0x1] %vm496, %v2728
    %v2745 = vld [vmem:[#allocation2] sm:$0xff]
    %v2746 = vld [vmem:[#allocation2 + $0x8] sm:$0xff]
    %v2747 = vld [vmem:[#allocation2 + $0x10] sm:$0xff]
    %v2748 = vld [vmem:[#allocation2 + $0x18] sm:$0xff]
    %v2749 = vld [vmem:[#allocation2 + $0x20] sm:$0xff]
    %v2750 = vld [vmem:[#allocation2 + $0x28] sm:$0xff]
    %v2751 = vld [vmem:[#allocation2 + $0x30] sm:$0xff]
    %v2752 = vld [vmem:[#allocation2 + $0x38] sm:$0xff]
    %v2753 = vld [vmem:[#allocation9] sm:$0xff]
    %v2754 = vld [vmem:[#allocation9 + $0x8] sm:$0xff]
    %v2755 = vld [vmem:[#allocation9 + $0x10] sm:$0xff]
    %v2756 = vld [vmem:[#allocation9 + $0x18] sm:$0xff]
    %v2757 = vld [vmem:[%s5] sm:$0x1]
    %v2759 = vperm.slane %v2757, 0
    %v2762 = vsel %vm103, %v2745, 0
    %v2765 = vsel %vm103, %v2746, 0
    %v2768 = vsel %vm103, %v2747, 0
    %v2771 = vsel %vm103, %v2748, 0
    %v2774 = vsel %vm103, %v2749, 0
    %v2777 = vsel %vm103, %v2750, 0
    %v2780 = vsel %vm103, %v2751, 0
    %v2783 = vsel %vm103, %v2752, 0
    %2785 = vmatpush.msra.mxu0 0.0
    %2786 = vmatpush.msra.mxu0 0.0
    %2787 = vmatpush.msra.mxu0 0.0
    %2788 = vmatpush.msra.mxu0 0.0
    %2789 = vmatpush.msra.mxu0 0.0
    %2790 = vmatpush.msra.mxu0 0.0
    %2791 = vmatpush.msra.mxu0 0.0
    %2792 = vmatpush.msra.mxu0 0.0
    %2793 = vmatpush.msra.mxu0 0.0
    %2794 = vmatpush.msra.mxu0 0.0
    %2795 = vmatpush.msra.mxu0 0.0
    %2796 = vmatpush.msra.mxu0 0.0
    %2797 = vmatpush.msra.mxu0 %v2756
    %2798 = vmatpush.msra.mxu0 %v2755
    %2799 = vmatpush.msra.mxu0 %v2754
    %2800 = vmatpush.msra.mxu0 %v2753
    %2801 = vmatmul.f32.gmra.mxu0 %v2762
    %v2802 = vpop.f32.mrf.mxu0
    %v2803 = vadd.f32 %v2759, %v2802
    %2804 = vmatmul.f32.gmra.mxu0 %v2765
    %v2805 = vpop.f32.mrf.mxu0
    %v2806 = vadd.f32 %v2759, %v2805
    %2807 = vmatmul.f32.gmra.mxu0 %v2768
    %v2808 = vpop.f32.mrf.mxu0
    %v2809 = vadd.f32 %v2759, %v2808
    %2810 = vmatmul.f32.gmra.mxu0 %v2771
    %v2811 = vpop.f32.mrf.mxu0
    %v2812 = vadd.f32 %v2759, %v2811
    %2813 = vmatmul.f32.gmra.mxu0 %v2774
    %v2814 = vpop.f32.mrf.mxu0
    %v2815 = vadd.f32 %v2759, %v2814
    %2816 = vmatmul.f32.gmra.mxu0 %v2777
    %v2817 = vpop.f32.mrf.mxu0
    %v2818 = vadd.f32 %v2759, %v2817
    %2819 = vmatmul.f32.gmra.mxu0 %v2780
    %v2820 = vpop.f32.mrf.mxu0
    %v2821 = vadd.f32 %v2759, %v2820
    %2822 = vmatmul.f32.gmra.mxu0 %v2783
    %v2823 = vpop.f32.mrf.mxu0
    %v2824 = vadd.f32 %v2759, %v2823
    %2825 = vdwg.mxu0
    %2826 = vst [vmem:[#allocation11] sm:$0xff] %v2803
    %2827 = vst [vmem:[#allocation11 + $0x8] sm:$0xff] %v2806
    %2828 = vst [vmem:[#allocation11 + $0x10] sm:$0xff] %v2809
    %2829 = vst [vmem:[#allocation11 + $0x18] sm:$0xff] %v2812
    %2830 = vst [vmem:[#allocation11 + $0x20] sm:$0xff] %v2815
    %2831 = vst [vmem:[#allocation11 + $0x28] sm:$0xff] %v2818
    %2832 = vst [vmem:[#allocation11 + $0x30] sm:$0xff] %v2821
    %2833 = vst [vmem:[#allocation11 + $0x38] sm:$0xff] %v2824
    // Predicated region
    $region42: #{tpu_custom_call.1} parent=1 // pred_check
      _
    $region43: #{tpu_custom_call.1} parent=1 // pred_check_branch
      %2835 = sbr.rel (0) target = $region45
    $region44: #{tpu_custom_call.1} parent=1 // pred_region
      %2837 = vsyncadd [#allocation5], 0
      %s2838 = sshll.u32 [#allocation11], 4
      %s2839 = int_to_ptr.vmem [resolvable:$true] %s2838
      %s2840 = sshll.u32 %s6, 4
      %s2841 = int_to_ptr.hbm [resolvable:$true] %s2840
      %2846 = dma.vmem_to_hbm [thread:$0]  %s2839, 1024, %s2841, [#allocation5], 128, 128, 8
    $region45: #{tpu_custom_call.1} parent=1 // pred_fallthru
      _
    // Predicated region
    $region46: #{tpu_custom_call.1} parent=1 // pred_check
      _
    $region47: #{tpu_custom_call.1} parent=1 // pred_check_branch
      %2848 = sbr.rel (0) target = $region49
    $region48: #{tpu_custom_call.1} parent=1 // pred_region
      %2850 = dma.done [#allocation5], 1024
    $region49: #{tpu_custom_call.1} parent=1 // pred_fallthru
      _
    %2851 = vsyncpa [#allocation4], 1
    %2852 = vsyncpa [#allocation7], 1
    %2853 = vsyncpa [#allocation10], 1
    %2854 = vsyncpa [#allocation5], 1

</llo_original>
